<compile_context>
chip_gen: v7x
topology: tpu7x:2x2x1
jax: 0.10.0
libtpu: 0.0.40
codegen_flags: <defaults>
</compile_context>

<pallas_src>
import jax
import jax.numpy as jnp
from jax.experimental import pallas as pl
from jax.experimental.pallas import tpu as pltpu

VMEM = pltpu.MemorySpace.VMEM


# ------------------------------ fused forward kernel ------------------------------
def _simple_hgn_kernel(src_ref, dst_ref, dst_row_ref, x_ref,
                       w1_ref, b1_ref, w2_ref, b2_ref,
                       wcat1_ref, rel1_ref, wcat2_ref, rel2_ref,
                       out_ref):
    f32 = jnp.float32
    n = x_ref.shape[0]
    e = src_ref.shape[0]
    hdim = wcat1_ref.shape[0]          # conv in_channels == out_channels == hidden

    # ---- lin1 + LeakyReLU(0.01), fused ----
    h = jnp.dot(x_ref[...], w1_ref[...], preferred_element_type=f32) + b1_ref[...]
    h = jnp.where(h > 0, h, 0.01 * h)

    # ---- gather/scatter operators built in-register from int32 index columns ----
    iota_en = jax.lax.broadcasted_iota(jnp.int32, (e, n), 1)        # (E, N)
    iota_ne = jax.lax.broadcasted_iota(jnp.int32, (n, e), 0)        # (N, E)
    src_oh = (src_ref[...] == iota_en).astype(f32)                  # (E, N): edge <- src
    dst_mask = dst_ref[...] == iota_en                              # (E, N) bool
    dst_oh = dst_mask.astype(f32)                                   # (E, N): edge <- dst
    dst_oh_t = (dst_row_ref[...] == iota_ne).astype(f32)            # (N, E): scatter-add

    def conv(hin, wcat_ref, rel_e, final):
        # One node-level MXU pass: [W | W_res | W@a_i | W@a_j]  -> (N, 2H+2)
        big = jnp.dot(hin, wcat_ref[...], preferred_element_type=f32)
        wx = big[:, :hdim]                                          # (N, H)
        res = big[:, hdim:2 * hdim]                                  # (N, H) residual
        s_i = big[:, 2 * hdim:2 * hdim + 1]                          # (N, 1)
        s_j = big[:, 2 * hdim + 1:2 * hdim + 2]                      # (N, 1)

        # One src-side gather pass: (E,N) @ (N,H+1)
        gathered = jnp.dot(src_oh, jnp.concatenate([wx, s_j], axis=1),
                           preferred_element_type=f32)               # (E, H+1)
        wx_j = gathered[:, :hdim]                                     # (E, H)
        sj_e = gathered[:, hdim:hdim + 1]                             # (E, 1)
        si_e = jnp.dot(dst_oh, s_i, preferred_element_type=f32)      # (E, 1)

        logit = si_e + sj_e + rel_e
        logit = jnp.where(logit > 0, logit, 0.2 * logit)             # LeakyReLU(0.2)

        # Exact per-destination segment max (finite fill so 0 * fill stays finite).
        masked = jnp.where(dst_mask, logit, -1e30)                   # (E, N)
        node_max = jnp.max(masked, axis=0, keepdims=True)            # (1, N)
        edge_max = jnp.sum(dst_oh * node_max, axis=1, keepdims=True)  # (E, 1)
        p = jnp.exp(logit - edge_max)                                 # (E, 1), <= 1

        # One scatter pass (E,N -> N) carrying both numerator and denominator,
        # then normalize at node level (mathematically identical to per-edge alpha).
        sums = jnp.dot(dst_oh_t, jnp.concatenate([wx_j * p, p], axis=1),
                       preferred_element_type=f32)                    # (N, H+1)
        denom = jnp.maximum(sums[:, hdim:hdim + 1], 1e-30)            # isolated-node guard
        inv = pl.reciprocal(denom, approx=True)                       # EUP
        inv = inv * (2.0 - denom * inv)                               # Newton x2 -> f32
        inv = inv * (2.0 - denom * inv)
        node_emb = sums[:, :hdim] * inv                                # (N, H)

        out = node_emb + res
        # ELU(alpha=1); exp only of the clamped (<=0) branch.
        out = jnp.where(out > 0, out, jnp.exp(jnp.minimum(out, 0.0)) - 1.0)
        if final:                                                      # F.normalize(dim=1)
            nrm2 = jnp.sum(out * out, axis=1, keepdims=True)
            out = out * jax.lax.rsqrt(jnp.maximum(nrm2, 1e-24))
        return out

    o1 = conv(h, wcat1_ref, rel1_ref[...], final=False)
    # F.dropout(..., training=self.training): identity in eval mode.
    o2 = conv(o1, wcat2_ref, rel2_ref[...], final=True)

    # ---- lin2 + LeakyReLU(0.01), fused ----
    y = jnp.dot(o2, w2_ref[...], preferred_element_type=f32) + b2_ref[...]
    out_ref[...] = jnp.where(y > 0, y, 0.01 * y)


# ----------------------------------- wrapper -----------------------------------
def simple_hgn_forward(params, x, edge_index, edge_type, *, num_rels=None, beta=0.05):
    # NOTE: beta / pre_alpha only affect the alpha value the PyTorch conv *returns*,
    # never the node embeddings, so they cannot influence the module output.
    del num_rels, beta
    n, c_in = x.shape
    e = edge_index.shape[1]
    hidden = params["conv1"]["W"].shape[1]
    c_out = params["lin2_w"].shape[1]

    src_col = edge_index[0].astype(jnp.int32).reshape(e, 1)
    dst_col = edge_index[1].astype(jnp.int32).reshape(e, 1)
    dst_row = edge_index[1].astype(jnp.int32).reshape(1, e)

    def fold(cp):
        hdim = cp["W"].shape[1]
        a = cp["a"]                                              # (3H, 1)
        wa_i = cp["W"] @ a[:hdim]                                # (H, 1): W @ a_i
        wa_j = cp["W"] @ a[hdim:2 * hdim]                        # (H, 1): W @ a_j
        wcat = jnp.concatenate([cp["W"], cp["W_res"], wa_i, wa_j],
                               axis=1).astype(jnp.float32)       # (H, 2H+2)
        rel_row = (cp["rel_emb"] @ (cp["W_r"] @ a[2 * hdim:])).reshape(-1)  # (R,)
        rel_e = rel_row[edge_type].reshape(e, 1).astype(jnp.float32)        # (E, 1)
        return wcat, rel_e

    wcat1, rel1_e = fold(params["conv1"])
    wcat2, rel2_e = fold(params["conv2"])

    # Scoped-VMEM ceiling sized from the dense-path footprint (with headroom),
    # so the whole-graph kernel is not rejected by the default 16/32 MiB limit.
    est = 4 * (6 * e * n + 8 * (e + n) * (2 * hidden + 4) + n * (c_in + c_out) + 4096)
    vmem_limit = int(min(128 * 1024 * 1024, max(32 * 1024 * 1024, 2 * est)))

    vmem = pl.BlockSpec(memory_space=VMEM)
    return pl.pallas_call(
        _simple_hgn_kernel,
        out_shape=jax.ShapeDtypeStruct((n, c_out), jnp.float32),
        in_specs=[vmem] * 12,
        out_specs=vmem,
        compiler_params=pltpu.CompilerParams(vmem_limit_bytes=vmem_limit),
    )(src_col, dst_col, dst_row, x,
      params["lin1_w"], params["lin1_b"], params["lin2_w"], params["lin2_b"],
      wcat1, rel1_e, wcat2, rel2_e)


# ----------------------------- pure-JAX reference ------------------------------
def _reference(params, x, edge_index, edge_type, *, beta=0.05):
    def lrelu(v, s):
        return jnp.where(v > 0, v, s * v)

    def conv(h, cp, pre_alpha, final):
        src, dst = edge_index[0], edge_index[1]
        n, hid = h.shape[0], cp["W"].shape[1]
        wx = h @ cp["W"]
        wx_j, wx_i = wx[src], wx[dst]
        wr = cp["rel_emb"][edge_type] @ cp["W_r"]
        a = cp["a"]
        logits = (wx_i @ a[:hid] + wx_j @ a[hid:2 * hid] + wr @ a[2 * hid:])[:, 0]
        logits = lrelu(logits, 0.2)
        seg_max = jax.ops.segment_max(logits, dst, num_segments=n)
        ex = jnp.exp(logits - seg_max[dst])
        den = jax.ops.segment_sum(ex, dst, num_segments=n)
        alpha = (ex / den[dst])[:, None]
        alpha_store = alpha if pre_alpha is None else alpha * (1 - beta) + pre_alpha * beta
        node_emb = jax.ops.segment_sum(wx_j * alpha, dst, num_segments=n)
        out = node_emb + h @ cp["W_res"]
        out = jnp.where(out > 0, out, jnp.exp(out) - 1.0)
        if final:
            out = out / jnp.maximum(jnp.linalg.norm(out, axis=1, keepdims=True), 1e-12)
        return out, alpha_store

    h = lrelu(x @ params["lin1_w"] + params["lin1_b"], 0.01)
    o1, a1 = conv(h, params["conv1"], None, False)
    o2, _ = conv(o1, params["conv2"], a1, True)
    return lrelu(o2 @ params["lin2_w"] + params["lin2_b"], 0.01)


# ------------------------------------ main -------------------------------------
if __name__ == "__main__":
    key = jax.random.PRNGKey(0)
    N, E = 16, 48
    in_channels, hidden, out_channels = 24, 32, 16
    rel_dim, num_rels = 200, 3
    beta = 0.05

    ks = jax.random.split(key, 14)

    def init(k, shape, scale=0.1):
        return (scale * jax.random.normal(k, shape)).astype(jnp.float32)

    def conv_params(k0, k1, k2, k3, k4):
        return {
            "W":      init(k0, (hidden, hidden)),      # W.weight^T
            "W_r":    init(k1, (rel_dim, hidden)),     # W_r.weight^T
            "W_res":  init(k2, (hidden, hidden)),      # W_res.weight^T
            "a":      init(k3, (3 * hidden, 1)),       # a.weight^T
            "rel_emb": init(k4, (num_rels, rel_dim)),
        }

    params = {
        "lin1_w": init(ks[0], (in_channels, hidden)),
        "lin1_b": init(ks[1], (1, hidden)),
        "lin2_w": init(ks[2], (hidden, out_channels)),
        "lin2_b": init(ks[3], (1, out_channels)),
        "conv1": conv_params(ks[4], ks[5], ks[6], ks[7], ks[8]),
        "conv2": conv_params(ks[9], ks[10], ks[11], ks[12], ks[13]),
    }

    kx, ke, kt = jax.random.split(jax.random.PRNGKey(1), 3)
    x = (0.5 * jax.random.normal(kx, (N, in_channels))).astype(jnp.float32)
    edge_index = jax.random.randint(ke, (2, E), 0, N, dtype=jnp.int32)
    edge_type = jax.random.randint(kt, (E,), 0, num_rels, dtype=jnp.int32)

    out = simple_hgn_forward(params, x, edge_index, edge_type,
                             num_rels=num_rels, beta=beta)
    out = jax.block_until_ready(out)

    ref = _reference(params, x, edge_index, edge_type, beta=beta)
    assert out.shape == (N, out_channels)
    assert jnp.allclose(out, ref, atol=2e-4, rtol=2e-4), "mismatch vs reference"

    print("KERNEL_OK")
</pallas_src>

<mosaic_0001>
module attributes {stable_mosaic.version = 11 : i64} {
  func.func @_simple_hgn_kernel(%arg0: memref<48x1xi32, #tpu.memory_space<vmem>>, %arg1: memref<48x1xi32, #tpu.memory_space<vmem>>, %arg2: memref<1x48xi32, #tpu.memory_space<vmem>>, %arg3: memref<16x24xf32, #tpu.memory_space<vmem>>, %arg4: memref<24x32xf32, #tpu.memory_space<vmem>>, %arg5: memref<1x32xf32, #tpu.memory_space<vmem>>, %arg6: memref<32x16xf32, #tpu.memory_space<vmem>>, %arg7: memref<1x16xf32, #tpu.memory_space<vmem>>, %arg8: memref<32x66xf32, #tpu.memory_space<vmem>>, %arg9: memref<48x1xf32, #tpu.memory_space<vmem>>, %arg10: memref<32x66xf32, #tpu.memory_space<vmem>>, %arg11: memref<48x1xf32, #tpu.memory_space<vmem>>, %arg12: memref<16x16xf32, #tpu.memory_space<vmem>>) attributes {dimension_semantics = [], scalar_prefetch = 0 : i64, scratch_operands = 0 : i64, tpu.core_type = #tpu.core_type<tc>} {
    %c0 = arith.constant 0 : index
    %c0_0 = arith.constant 0 : index
    %0 = vector.load %arg3[%c0, %c0_0] : memref<16x24xf32, #tpu.memory_space<vmem>>, vector<16x24xf32>
    %c0_1 = arith.constant 0 : index
    %c0_2 = arith.constant 0 : index
    %1 = vector.load %arg4[%c0_1, %c0_2] : memref<24x32xf32, #tpu.memory_space<vmem>>, vector<24x32xf32>
    %cst = arith.constant dense<0.000000e+00> : vector<16x32xf32>
    %2 = tpu.matmul %0, %1, %cst {dimension_numbers = #tpu.dot_dimension_numbers<[1], [0], [0], [1], [0, 0, 1, 1], [], []>} : vector<16x24xf32>, vector<24x32xf32>, vector<16x32xf32> -> vector<16x32xf32>
    %c0_3 = arith.constant 0 : index
    %c0_4 = arith.constant 0 : index
    %3 = vector.load %arg5[%c0_3, %c0_4] : memref<1x32xf32, #tpu.memory_space<vmem>>, vector<1x32xf32>
    %4 = vector.broadcast %3 : vector<1x32xf32> to vector<16x32xf32>
    %5 = arith.addf %2, %4 : vector<16x32xf32>
    %cst_5 = arith.constant 0.000000e+00 : f32
    %6 = vector.broadcast %cst_5 : f32 to vector<16x32xf32>
    %7 = arith.cmpf ogt, %5, %6 : vector<16x32xf32>
    %cst_6 = arith.constant 0.00999999977 : f32
    %8 = vector.broadcast %cst_6 : f32 to vector<16x32xf32>
    %9 = arith.mulf %8, %5 : vector<16x32xf32>
    %10 = arith.select %7, %5, %9 : vector<16x32xi1>, vector<16x32xf32>
    %11 = tpu.iota {dimensions = array<i32: 1>} : vector<48x16xi32>
    %12 = tpu.iota {dimensions = array<i32: 0>} : vector<16x48xi32>
    %c0_7 = arith.constant 0 : index
    %c0_8 = arith.constant 0 : index
    %13 = vector.load %arg0[%c0_7, %c0_8] : memref<48x1xi32, #tpu.memory_space<vmem>>, vector<48x1xi32>
    %14 = vector.broadcast %13 : vector<48x1xi32> to vector<48x16xi32>
    %15 = arith.cmpi eq, %14, %11 : vector<48x16xi32>
    %16 = arith.extui %15 : vector<48x16xi1> to vector<48x16xi32>
    %17 = arith.sitofp %16 : vector<48x16xi32> to vector<48x16xf32>
    %c0_9 = arith.constant 0 : index
    %c0_10 = arith.constant 0 : index
    %18 = vector.load %arg1[%c0_9, %c0_10] : memref<48x1xi32, #tpu.memory_space<vmem>>, vector<48x1xi32>
    %19 = vector.broadcast %18 : vector<48x1xi32> to vector<48x16xi32>
    %20 = arith.cmpi eq, %19, %11 : vector<48x16xi32>
    %21 = arith.extui %20 : vector<48x16xi1> to vector<48x16xi32>
    %22 = arith.sitofp %21 : vector<48x16xi32> to vector<48x16xf32>
    %c0_11 = arith.constant 0 : index
    %c0_12 = arith.constant 0 : index
    %23 = vector.load %arg2[%c0_11, %c0_12] : memref<1x48xi32, #tpu.memory_space<vmem>>, vector<1x48xi32>
    %24 = vector.broadcast %23 : vector<1x48xi32> to vector<16x48xi32>
    %25 = arith.cmpi eq, %24, %12 : vector<16x48xi32>
    %26 = arith.extui %25 : vector<16x48xi1> to vector<16x48xi32>
    %27 = arith.sitofp %26 : vector<16x48xi32> to vector<16x48xf32>
    %c0_13 = arith.constant 0 : index
    %c0_14 = arith.constant 0 : index
    %28 = vector.load %arg9[%c0_13, %c0_14] : memref<48x1xf32, #tpu.memory_space<vmem>>, vector<48x1xf32>
    %c0_15 = arith.constant 0 : index
    %c0_16 = arith.constant 0 : index
    %29 = vector.load %arg8[%c0_15, %c0_16] : memref<32x66xf32, #tpu.memory_space<vmem>>, vector<32x66xf32>
    %cst_17 = arith.constant dense<0.000000e+00> : vector<16x66xf32>
    %30 = tpu.matmul %10, %29, %cst_17 {dimension_numbers = #tpu.dot_dimension_numbers<[1], [0], [0], [1], [0, 0, 1, 1], [], []>} : vector<16x32xf32>, vector<32x66xf32>, vector<16x66xf32> -> vector<16x66xf32>
    %31 = vector.extract_strided_slice %30 {offsets = [0, 0], sizes = [16, 32], strides = [1, 1]} : vector<16x66xf32> to vector<16x32xf32>
    %32 = vector.extract_strided_slice %30 {offsets = [0, 32], sizes = [16, 32], strides = [1, 1]} : vector<16x66xf32> to vector<16x32xf32>
    %33 = vector.extract_strided_slice %30 {offsets = [0, 64], sizes = [16, 1], strides = [1, 1]} : vector<16x66xf32> to vector<16x1xf32>
    %34 = vector.extract_strided_slice %30 {offsets = [0, 65], sizes = [16, 1], strides = [1, 1]} : vector<16x66xf32> to vector<16x1xf32>
    %35 = tpu.concatenate %31, %34 in 1 : vector<16x32xf32>, vector<16x1xf32> -> vector<16x33xf32>
    %cst_18 = arith.constant dense<0.000000e+00> : vector<48x33xf32>
    %36 = tpu.matmul %17, %35, %cst_18 {dimension_numbers = #tpu.dot_dimension_numbers<[1], [0], [0], [1], [0, 0, 1, 1], [], []>} : vector<48x16xf32>, vector<16x33xf32>, vector<48x33xf32> -> vector<48x33xf32>
    %37 = vector.extract_strided_slice %36 {offsets = [0, 0], sizes = [48, 32], strides = [1, 1]} : vector<48x33xf32> to vector<48x32xf32>
    %38 = vector.extract_strided_slice %36 {offsets = [0, 32], sizes = [48, 1], strides = [1, 1]} : vector<48x33xf32> to vector<48x1xf32>
    %cst_19 = arith.constant dense<0.000000e+00> : vector<48x1xf32>
    %39 = tpu.matmul %22, %33, %cst_19 {dimension_numbers = #tpu.dot_dimension_numbers<[1], [0], [0], [1], [0, 0, 1, 1], [], []>} : vector<48x16xf32>, vector<16x1xf32>, vector<48x1xf32> -> vector<48x1xf32>
    %40 = arith.addf %39, %38 : vector<48x1xf32>
    %41 = arith.addf %40, %28 : vector<48x1xf32>
    %cst_20 = arith.constant 0.000000e+00 : f32
    %42 = vector.broadcast %cst_20 : f32 to vector<48x1xf32>
    %43 = arith.cmpf ogt, %41, %42 : vector<48x1xf32>
    %cst_21 = arith.constant 2.000000e-01 : f32
    %44 = vector.broadcast %cst_21 : f32 to vector<48x1xf32>
    %45 = arith.mulf %44, %41 : vector<48x1xf32>
    %46 = arith.select %43, %41, %45 : vector<48x1xi1>, vector<48x1xf32>
    %cst_22 = arith.constant -1.000000e+30 : f32
    %47 = vector.shape_cast %46 : vector<48x1xf32> to vector<48x1xf32>
    %48 = vector.broadcast %47 : vector<48x1xf32> to vector<48x16xf32>
    %49 = vector.broadcast %cst_22 : f32 to vector<48x16xf32>
    %50 = arith.select %20, %48, %49 : vector<48x16xi1>, vector<48x16xf32>
    %cst_23 = arith.constant dense<0xFF800000> : vector<16xf32>
    %51 = vector.multi_reduction <maximumf>, %50, %cst_23 [0] : vector<48x16xf32> to vector<16xf32>
    %52 = vector.shape_cast %51 : vector<16xf32> to vector<1x16xf32>
    %53 = vector.broadcast %52 : vector<1x16xf32> to vector<48x16xf32>
    %54 = arith.mulf %22, %53 : vector<48x16xf32>
    %cst_24 = arith.constant dense<0.000000e+00> : vector<48xf32>
    %55 = vector.multi_reduction <add>, %54, %cst_24 [1] : vector<48x16xf32> to vector<48xf32>
    %56 = vector.shape_cast %55 : vector<48xf32> to vector<48x1xf32>
    %57 = arith.subf %46, %56 : vector<48x1xf32>
    %58 = math.exp %57 : vector<48x1xf32>
    %59 = vector.broadcast %58 : vector<48x1xf32> to vector<48x32xf32>
    %60 = arith.mulf %37, %59 : vector<48x32xf32>
    %61 = tpu.concatenate %60, %58 in 1 : vector<48x32xf32>, vector<48x1xf32> -> vector<48x33xf32>
    %cst_25 = arith.constant dense<0.000000e+00> : vector<16x33xf32>
    %62 = tpu.matmul %27, %61, %cst_25 {dimension_numbers = #tpu.dot_dimension_numbers<[1], [0], [0], [1], [0, 0, 1, 1], [], []>} : vector<16x48xf32>, vector<48x33xf32>, vector<16x33xf32> -> vector<16x33xf32>
    %63 = vector.extract_strided_slice %62 {offsets = [0, 32], sizes = [16, 1], strides = [1, 1]} : vector<16x33xf32> to vector<16x1xf32>
    %cst_26 = arith.constant 1.000000e-30 : f32
    %64 = vector.broadcast %cst_26 : f32 to vector<16x1xf32>
    %65 = arith.maximumf %63, %64 : vector<16x1xf32>
    %66 = tpu.reciprocal %65 {approx = true} : vector<16x1xf32> -> vector<16x1xf32>
    %67 = arith.mulf %65, %66 : vector<16x1xf32>
    %cst_27 = arith.constant 2.000000e+00 : f32
    %68 = vector.broadcast %cst_27 : f32 to vector<16x1xf32>
    %69 = arith.subf %68, %67 : vector<16x1xf32>
    %70 = arith.mulf %66, %69 : vector<16x1xf32>
    %71 = arith.mulf %65, %70 : vector<16x1xf32>
    %cst_28 = arith.constant 2.000000e+00 : f32
    %72 = vector.broadcast %cst_28 : f32 to vector<16x1xf32>
    %73 = arith.subf %72, %71 : vector<16x1xf32>
    %74 = arith.mulf %70, %73 : vector<16x1xf32>
    %75 = vector.extract_strided_slice %62 {offsets = [0, 0], sizes = [16, 32], strides = [1, 1]} : vector<16x33xf32> to vector<16x32xf32>
    %76 = vector.broadcast %74 : vector<16x1xf32> to vector<16x32xf32>
    %77 = arith.mulf %75, %76 : vector<16x32xf32>
    %78 = arith.addf %77, %32 : vector<16x32xf32>
    %cst_29 = arith.constant 0.000000e+00 : f32
    %79 = vector.broadcast %cst_29 : f32 to vector<16x32xf32>
    %80 = arith.cmpf ogt, %78, %79 : vector<16x32xf32>
    %cst_30 = arith.constant 0.000000e+00 : f32
    %81 = vector.broadcast %cst_30 : f32 to vector<16x32xf32>
    %82 = arith.minimumf %78, %81 : vector<16x32xf32>
    %83 = math.exp %82 : vector<16x32xf32>
    %cst_31 = arith.constant 1.000000e+00 : f32
    %84 = vector.broadcast %cst_31 : f32 to vector<16x32xf32>
    %85 = arith.subf %83, %84 : vector<16x32xf32>
    %86 = arith.select %80, %78, %85 : vector<16x32xi1>, vector<16x32xf32>
    %c0_32 = arith.constant 0 : index
    %c0_33 = arith.constant 0 : index
    %87 = vector.load %arg11[%c0_32, %c0_33] : memref<48x1xf32, #tpu.memory_space<vmem>>, vector<48x1xf32>
    %c0_34 = arith.constant 0 : index
    %c0_35 = arith.constant 0 : index
    %88 = vector.load %arg10[%c0_34, %c0_35] : memref<32x66xf32, #tpu.memory_space<vmem>>, vector<32x66xf32>
    %cst_36 = arith.constant dense<0.000000e+00> : vector<16x66xf32>
    %89 = tpu.matmul %86, %88, %cst_36 {dimension_numbers = #tpu.dot_dimension_numbers<[1], [0], [0], [1], [0, 0, 1, 1], [], []>} : vector<16x32xf32>, vector<32x66xf32>, vector<16x66xf32> -> vector<16x66xf32>
    %90 = vector.extract_strided_slice %89 {offsets = [0, 0], sizes = [16, 32], strides = [1, 1]} : vector<16x66xf32> to vector<16x32xf32>
    %91 = vector.extract_strided_slice %89 {offsets = [0, 32], sizes = [16, 32], strides = [1, 1]} : vector<16x66xf32> to vector<16x32xf32>
    %92 = vector.extract_strided_slice %89 {offsets = [0, 64], sizes = [16, 1], strides = [1, 1]} : vector<16x66xf32> to vector<16x1xf32>
    %93 = vector.extract_strided_slice %89 {offsets = [0, 65], sizes = [16, 1], strides = [1, 1]} : vector<16x66xf32> to vector<16x1xf32>
    %94 = tpu.concatenate %90, %93 in 1 : vector<16x32xf32>, vector<16x1xf32> -> vector<16x33xf32>
    %cst_37 = arith.constant dense<0.000000e+00> : vector<48x33xf32>
    %95 = tpu.matmul %17, %94, %cst_37 {dimension_numbers = #tpu.dot_dimension_numbers<[1], [0], [0], [1], [0, 0, 1, 1], [], []>} : vector<48x16xf32>, vector<16x33xf32>, vector<48x33xf32> -> vector<48x33xf32>
    %96 = vector.extract_strided_slice %95 {offsets = [0, 0], sizes = [48, 32], strides = [1, 1]} : vector<48x33xf32> to vector<48x32xf32>
    %97 = vector.extract_strided_slice %95 {offsets = [0, 32], sizes = [48, 1], strides = [1, 1]} : vector<48x33xf32> to vector<48x1xf32>
    %cst_38 = arith.constant dense<0.000000e+00> : vector<48x1xf32>
    %98 = tpu.matmul %22, %92, %cst_38 {dimension_numbers = #tpu.dot_dimension_numbers<[1], [0], [0], [1], [0, 0, 1, 1], [], []>} : vector<48x16xf32>, vector<16x1xf32>, vector<48x1xf32> -> vector<48x1xf32>
    %99 = arith.addf %98, %97 : vector<48x1xf32>
    %100 = arith.addf %99, %87 : vector<48x1xf32>
    %cst_39 = arith.constant 0.000000e+00 : f32
    %101 = vector.broadcast %cst_39 : f32 to vector<48x1xf32>
    %102 = arith.cmpf ogt, %100, %101 : vector<48x1xf32>
    %cst_40 = arith.constant 2.000000e-01 : f32
    %103 = vector.broadcast %cst_40 : f32 to vector<48x1xf32>
    %104 = arith.mulf %103, %100 : vector<48x1xf32>
    %105 = arith.select %102, %100, %104 : vector<48x1xi1>, vector<48x1xf32>
    %cst_41 = arith.constant -1.000000e+30 : f32
    %106 = vector.shape_cast %105 : vector<48x1xf32> to vector<48x1xf32>
    %107 = vector.broadcast %106 : vector<48x1xf32> to vector<48x16xf32>
    %108 = vector.broadcast %cst_41 : f32 to vector<48x16xf32>
    %109 = arith.select %20, %107, %108 : vector<48x16xi1>, vector<48x16xf32>
    %cst_42 = arith.constant dense<0xFF800000> : vector<16xf32>
    %110 = vector.multi_reduction <maximumf>, %109, %cst_42 [0] : vector<48x16xf32> to vector<16xf32>
    %111 = vector.shape_cast %110 : vector<16xf32> to vector<1x16xf32>
    %112 = vector.broadcast %111 : vector<1x16xf32> to vector<48x16xf32>
    %113 = arith.mulf %22, %112 : vector<48x16xf32>
    %cst_43 = arith.constant dense<0.000000e+00> : vector<48xf32>
    %114 = vector.multi_reduction <add>, %113, %cst_43 [1] : vector<48x16xf32> to vector<48xf32>
    %115 = vector.shape_cast %114 : vector<48xf32> to vector<48x1xf32>
    %116 = arith.subf %105, %115 : vector<48x1xf32>
    %117 = math.exp %116 : vector<48x1xf32>
    %118 = vector.broadcast %117 : vector<48x1xf32> to vector<48x32xf32>
    %119 = arith.mulf %96, %118 : vector<48x32xf32>
    %120 = tpu.concatenate %119, %117 in 1 : vector<48x32xf32>, vector<48x1xf32> -> vector<48x33xf32>
    %cst_44 = arith.constant dense<0.000000e+00> : vector<16x33xf32>
    %121 = tpu.matmul %27, %120, %cst_44 {dimension_numbers = #tpu.dot_dimension_numbers<[1], [0], [0], [1], [0, 0, 1, 1], [], []>} : vector<16x48xf32>, vector<48x33xf32>, vector<16x33xf32> -> vector<16x33xf32>
    %122 = vector.extract_strided_slice %121 {offsets = [0, 32], sizes = [16, 1], strides = [1, 1]} : vector<16x33xf32> to vector<16x1xf32>
    %cst_45 = arith.constant 1.000000e-30 : f32
    %123 = vector.broadcast %cst_45 : f32 to vector<16x1xf32>
    %124 = arith.maximumf %122, %123 : vector<16x1xf32>
    %125 = tpu.reciprocal %124 {approx = true} : vector<16x1xf32> -> vector<16x1xf32>
    %126 = arith.mulf %124, %125 : vector<16x1xf32>
    %cst_46 = arith.constant 2.000000e+00 : f32
    %127 = vector.broadcast %cst_46 : f32 to vector<16x1xf32>
    %128 = arith.subf %127, %126 : vector<16x1xf32>
    %129 = arith.mulf %125, %128 : vector<16x1xf32>
    %130 = arith.mulf %124, %129 : vector<16x1xf32>
    %cst_47 = arith.constant 2.000000e+00 : f32
    %131 = vector.broadcast %cst_47 : f32 to vector<16x1xf32>
    %132 = arith.subf %131, %130 : vector<16x1xf32>
    %133 = arith.mulf %129, %132 : vector<16x1xf32>
    %134 = vector.extract_strided_slice %121 {offsets = [0, 0], sizes = [16, 32], strides = [1, 1]} : vector<16x33xf32> to vector<16x32xf32>
    %135 = vector.broadcast %133 : vector<16x1xf32> to vector<16x32xf32>
    %136 = arith.mulf %134, %135 : vector<16x32xf32>
    %137 = arith.addf %136, %91 : vector<16x32xf32>
    %cst_48 = arith.constant 0.000000e+00 : f32
    %138 = vector.broadcast %cst_48 : f32 to vector<16x32xf32>
    %139 = arith.cmpf ogt, %137, %138 : vector<16x32xf32>
    %cst_49 = arith.constant 0.000000e+00 : f32
    %140 = vector.broadcast %cst_49 : f32 to vector<16x32xf32>
    %141 = arith.minimumf %137, %140 : vector<16x32xf32>
    %142 = math.exp %141 : vector<16x32xf32>
    %cst_50 = arith.constant 1.000000e+00 : f32
    %143 = vector.broadcast %cst_50 : f32 to vector<16x32xf32>
    %144 = arith.subf %142, %143 : vector<16x32xf32>
    %145 = arith.select %139, %137, %144 : vector<16x32xi1>, vector<16x32xf32>
    %146 = arith.mulf %145, %145 : vector<16x32xf32>
    %cst_51 = arith.constant dense<0.000000e+00> : vector<16xf32>
    %147 = vector.multi_reduction <add>, %146, %cst_51 [1] : vector<16x32xf32> to vector<16xf32>
    %148 = vector.shape_cast %147 : vector<16xf32> to vector<16x1xf32>
    %cst_52 = arith.constant 1.000000e-24 : f32
    %149 = vector.broadcast %cst_52 : f32 to vector<16x1xf32>
    %150 = arith.maximumf %148, %149 : vector<16x1xf32>
    %151 = math.rsqrt %150 : vector<16x1xf32>
    %152 = vector.broadcast %151 : vector<16x1xf32> to vector<16x32xf32>
    %153 = arith.mulf %145, %152 : vector<16x32xf32>
    %c0_53 = arith.constant 0 : index
    %c0_54 = arith.constant 0 : index
    %154 = vector.load %arg6[%c0_53, %c0_54] : memref<32x16xf32, #tpu.memory_space<vmem>>, vector<32x16xf32>
    %cst_55 = arith.constant dense<0.000000e+00> : vector<16x16xf32>
    %155 = tpu.matmul %153, %154, %cst_55 {dimension_numbers = #tpu.dot_dimension_numbers<[1], [0], [0], [1], [0, 0, 1, 1], [], []>} : vector<16x32xf32>, vector<32x16xf32>, vector<16x16xf32> -> vector<16x16xf32>
    %c0_56 = arith.constant 0 : index
    %c0_57 = arith.constant 0 : index
    %156 = vector.load %arg7[%c0_56, %c0_57] : memref<1x16xf32, #tpu.memory_space<vmem>>, vector<1x16xf32>
    %157 = vector.broadcast %156 : vector<1x16xf32> to vector<16x16xf32>
    %158 = arith.addf %155, %157 : vector<16x16xf32>
    %cst_58 = arith.constant 0.000000e+00 : f32
    %159 = vector.broadcast %cst_58 : f32 to vector<16x16xf32>
    %160 = arith.cmpf ogt, %158, %159 : vector<16x16xf32>
    %cst_59 = arith.constant 0.00999999977 : f32
    %161 = vector.broadcast %cst_59 : f32 to vector<16x16xf32>
    %162 = arith.mulf %161, %158 : vector<16x16xf32>
    %163 = arith.select %160, %158, %162 : vector<16x16xi1>, vector<16x16xf32>
    %c0_60 = arith.constant 0 : index
    %c0_61 = arith.constant 0 : index
    %164 = vector.load %arg12[%c0_60, %c0_61] : memref<16x16xf32, #tpu.memory_space<vmem>>, vector<16x16xf32>
    tpu.vector_store %arg12[%c0_60, %c0_61], %163 {strides = array<i32>} : memref<16x16xf32, #tpu.memory_space<vmem>>, vector<16x16xf32>,
    return
  }
}

</mosaic_0001>

<llo_original>
// kernel: tpu_custom_call.1
$region0: #{tpu_custom_call.1}
  #allocation0 [shape = 'u32[]', space=smem, size = 0x4, offset = 0x4, fixed_abs, tag = 'smem constant byte address 0x4 - core index']
  #allocation1 [shape = 'u32[144,128]{1,0:T(1,128)}', space=vmem, size = 0x12000, scoped, tag = 'internal scratch']
  %s0 = inlined_call_operand.vmem [shape: s32[48,1], index: 0, kind: input, shape index: {}]
  %s1 = inlined_call_operand.vmem [shape: s32[48,1], index: 1, kind: input, shape index: {}]
  %s2 = inlined_call_operand.vmem [shape: s32[1,48], index: 2, kind: input, shape index: {}]
  %s3 = inlined_call_operand.vmem [shape: f32[16,24], index: 3, kind: input, shape index: {}]
  %s4 = inlined_call_operand.vmem [shape: f32[24,32], index: 4, kind: input, shape index: {}]
  %s5 = inlined_call_operand.vmem [shape: f32[1,32], index: 5, kind: input, shape index: {}]
  %s6 = inlined_call_operand.vmem [shape: f32[32,16], index: 6, kind: input, shape index: {}]
  %s7 = inlined_call_operand.vmem [shape: f32[1,16], index: 7, kind: input, shape index: {}]
  %s8 = inlined_call_operand.vmem [shape: f32[32,66], index: 8, kind: input, shape index: {}]
  %s9 = inlined_call_operand.vmem [shape: f32[48,1], index: 9, kind: input, shape index: {}]
  %s10 = inlined_call_operand.vmem [shape: f32[32,66], index: 10, kind: input, shape index: {}]
  %s11 = inlined_call_operand.vmem [shape: f32[48,1], index: 11, kind: input, shape index: {}]
  %s12 = inlined_call_operand.hbm [shape: f32[16,16], index: 12, kind: output, shape index: {}]
  %s13 = sld [smem:[#allocation0]]
  $region58: #{tpu_custom_call.1} parent=0
    _
  %s15 = ssub.s32 1, %s13
  %s16 = scalar_select 0, %s15, %s13
  $region1: #{tpu_custom_call.1} parent=0
    #allocation2 [shape = 'u8[8192]{0}', space=vmem, size = 0x2000, scoped, tag = 'output window, operand 0, single buffered']
    #allocation3 [shape = 's32[1]{0}', space=sflag, size = 0x4, scoped, tag = 'scoped memory for tpu_custom_call.1']
    %17 = vsyncpa [#allocation3], 0
    // Predicated region
    $region2: #{tpu_custom_call.1} parent=1 // pred_check
      _
    $region3: #{tpu_custom_call.1} parent=1 // pred_check_branch
      %19 = sbr.rel (0) target = $region5
    $region4: #{tpu_custom_call.1} parent=1 // pred_region
      _
    $region5: #{tpu_custom_call.1} parent=1 // pred_fallthru
      _
    // Predicated region
    $region6: #{tpu_custom_call.1} parent=1 // pred_check
      _
    $region7: #{tpu_custom_call.1} parent=1 // pred_check_branch
      %21 = sbr.rel (0) target = $region9
    $region8: #{tpu_custom_call.1} parent=1 // pred_region
      _
    $region9: #{tpu_custom_call.1} parent=1 // pred_fallthru
      _
    // Predicated region
    $region10: #{tpu_custom_call.1} parent=1 // pred_check
      _
    $region11: #{tpu_custom_call.1} parent=1 // pred_check_branch
      %23 = sbr.rel (0) target = $region13
    $region12: #{tpu_custom_call.1} parent=1 // pred_region
      _
    $region13: #{tpu_custom_call.1} parent=1 // pred_fallthru
      _
    // Predicated region
    $region14: #{tpu_custom_call.1} parent=1 // pred_check
      _
    $region15: #{tpu_custom_call.1} parent=1 // pred_check_branch
      %25 = sbr.rel (0) target = $region17
    $region16: #{tpu_custom_call.1} parent=1 // pred_region
      _
    $region17: #{tpu_custom_call.1} parent=1 // pred_fallthru
      _
    // Predicated region
    $region18: #{tpu_custom_call.1} parent=1 // pred_check
      _
    $region19: #{tpu_custom_call.1} parent=1 // pred_check_branch
      %27 = sbr.rel (0) target = $region21
    $region20: #{tpu_custom_call.1} parent=1 // pred_region
      _
    $region21: #{tpu_custom_call.1} parent=1 // pred_fallthru
      _
    // Predicated region
    $region22: #{tpu_custom_call.1} parent=1 // pred_check
      _
    $region23: #{tpu_custom_call.1} parent=1 // pred_check_branch
      %29 = sbr.rel (0) target = $region25
    $region24: #{tpu_custom_call.1} parent=1 // pred_region
      _
    $region25: #{tpu_custom_call.1} parent=1 // pred_fallthru
      _
    // Predicated region
    $region26: #{tpu_custom_call.1} parent=1 // pred_check
      _
    $region27: #{tpu_custom_call.1} parent=1 // pred_check_branch
      %31 = sbr.rel (0) target = $region29
    $region28: #{tpu_custom_call.1} parent=1 // pred_region
      _
    $region29: #{tpu_custom_call.1} parent=1 // pred_fallthru
      _
    // Predicated region
    $region30: #{tpu_custom_call.1} parent=1 // pred_check
      _
    $region31: #{tpu_custom_call.1} parent=1 // pred_check_branch
      %33 = sbr.rel (0) target = $region33
    $region32: #{tpu_custom_call.1} parent=1 // pred_region
      _
    $region33: #{tpu_custom_call.1} parent=1 // pred_fallthru
      _
    // Predicated region
    $region34: #{tpu_custom_call.1} parent=1 // pred_check
      _
    $region35: #{tpu_custom_call.1} parent=1 // pred_check_branch
      %35 = sbr.rel (0) target = $region37
    $region36: #{tpu_custom_call.1} parent=1 // pred_region
      _
    $region37: #{tpu_custom_call.1} parent=1 // pred_fallthru
      _
    // Predicated region
    $region38: #{tpu_custom_call.1} parent=1 // pred_check
      _
    $region39: #{tpu_custom_call.1} parent=1 // pred_check_branch
      %37 = sbr.rel (0) target = $region41
    $region40: #{tpu_custom_call.1} parent=1 // pred_region
      _
    $region41: #{tpu_custom_call.1} parent=1 // pred_fallthru
      _
    // Predicated region
    $region42: #{tpu_custom_call.1} parent=1 // pred_check
      _
    $region43: #{tpu_custom_call.1} parent=1 // pred_check_branch
      %39 = sbr.rel (0) target = $region45
    $region44: #{tpu_custom_call.1} parent=1 // pred_region
      _
    $region45: #{tpu_custom_call.1} parent=1 // pred_fallthru
      _
    // Predicated region
    $region46: #{tpu_custom_call.1} parent=1 // pred_check
      _
    $region47: #{tpu_custom_call.1} parent=1 // pred_check_branch
      %41 = sbr.rel (0) target = $region49
    $region48: #{tpu_custom_call.1} parent=1 // pred_region
      _
    $region49: #{tpu_custom_call.1} parent=1 // pred_fallthru
      _
    %v42 = vld [vmem:[%s3] sm:$0xff]
    %v43 = vld [vmem:[%s3 + $0x8] sm:$0xff]
    %v44 = vld [vmem:[%s4] sm:$0xff]
    %v45 = vld [vmem:[%s4 + $0x8] sm:$0xff]
    %v46 = vld [vmem:[%s4 + $0x10] sm:$0xff]
    %v47 = vld [vmem:[%s5] sm:$0x1]
    %v49 = vlaneseq
    %v50 = vshrl.u32 %v49, 7
    %v51 = vsub.s32 0, %v50
    %v52 = vrot.slane %v47, %v51
    %vm54 = vcmask 195584
    %v56 = vsel %vm54, %v42, 0
    %v59 = vsel %vm54, %v43, 0
    %61 = vmatprep.subr.mxu0 0.0
    %62 = vmatpush1.msra.mxu0 %v44
    %63 = vmatprep.subr.mxu0 0.0
    %64 = vmatpush1.msra.mxu0 %v45
    %65 = vmatprep.subr.mxu0 0.0
    %66 = vmatpush1.msra.mxu0 %v46
    %67 = vmatprep.subr.mxu0 0.0
    %68 = vmatpush1.msra.mxu0 0.0
    %69 = vmatprep.subr.mxu0 0.0
    %70 = vmatpush1.msra.mxu0 0.0
    %71 = vmatprep.subr.mxu0 0.0
    %72 = vmatpush1.msra.mxu0 0.0
    %73 = vmatprep.subr.mxu0 0.0
    %74 = vmatpush1.msra.mxu0 0.0
    %75 = vmatprep.subr.mxu0 0.0
    %76 = vmatpush1.msra.mxu0 0.0
    %77 = vmatprep.subr.mxu0 0.0
    %78 = vmatpush1.msra.mxu0 0.0
    %79 = vmatprep.subr.mxu0 0.0
    %80 = vmatpush1.msra.mxu0 0.0
    %81 = vmatprep.subr.mxu0 0.0
    %82 = vmatpush1.msra.mxu0 0.0
    %83 = vmatprep.subr.mxu0 0.0
    %84 = vmatpush1.msra.mxu0 0.0
    %85 = vmatprep.subr.mxu0 0.0
    %86 = vmatpush1.msra.mxu0 0.0
    %87 = vmatprep.subr.mxu0 0.0
    %88 = vmatpush1.msra.mxu0 0.0
    %89 = vmatprep.subr.mxu0 0.0
    %90 = vmatpush1.msra.mxu0 0.0
    %91 = vmatprep.subr.mxu0 0.0
    %92 = vmatpush1.msra.mxu0 0.0
    %93 = vmatprep.subr.mxu0 0.0
    %94 = vmatpush1.msra.mxu0 0.0
    %95 = vmatprep.subr.mxu0 0.0
    %96 = vmatpush1.msra.mxu0 0.0
    %97 = vmatprep.subr.mxu0 0.0
    %98 = vmatpush1.msra.mxu0 0.0
    %99 = vmatprep.subr.mxu0 0.0
    %100 = vmatpush1.msra.mxu0 0.0
    %101 = vmatprep.subr.mxu0 0.0
    %102 = vmatpush1.msra.mxu0 0.0
    %103 = vmatprep.subr.mxu0 0.0
    %104 = vmatpush1.msra.mxu0 0.0
    %105 = vmatprep.subr.mxu0 0.0
    %106 = vmatpush1.msra.mxu0 0.0
    %107 = vmatprep.subr.mxu0 0.0
    %108 = vmatpush1.msra.mxu0 0.0
    %109 = vmatprep.subr.mxu0 0.0
    %110 = vmatpush1.msra.mxu0 0.0
    %111 = vmatprep.subr.mxu0 0.0
    %112 = vmatpush1.msra.mxu0 0.0
    %113 = vmatprep.subr.mxu0 0.0
    %114 = vmatpush1.msra.mxu0 0.0
    %115 = vmatprep.subr.mxu0 0.0
    %116 = vmatpush1.msra.mxu0 0.0
    %117 = vmatprep.subr.mxu0 0.0
    %118 = vmatpush1.msra.mxu0 0.0
    %119 = vmatprep.subr.mxu0 0.0
    %120 = vmatpush1.msra.mxu0 0.0
    %121 = vmatprep.subr.mxu0 0.0
    %122 = vmatpush1.msra.mxu0 0.0
    %123 = vmatprep.subr.mxu0 0.0
    %124 = vmatpush1.msra.mxu0 0.0
    %125 = vmatprep.mubr.f32.mxu0 0.0
    %126 = vmatmul.mubr.f32.gmra.mrb[0].mxu0 %v56
    %v127 = vpop.f32.mrb[0].mxu0
    %v128 = vadd.f32 %v52, %v127
    %v129 = vpop.f32.mrb[0].mxu0
    %130 = vmatprep.mubr.f32.mxu0 0.0
    %131 = vmatmul.mubr.f32.gmra.mrb[0].mxu0 %v59
    %v132 = vpop.f32.mrb[0].mxu0
    %v133 = vadd.f32 %v52, %v132
    %v134 = vpop.f32.mrb[0].mxu0
    %135 = vdwg.mxu0
    %vm136 = vcmp.gt.f32.partialorder %v128, 0.0
    %vm137 = vcmp.gt.f32.partialorder %v133, 0.0
    %v138 = vmul.f32 %v128, 0.01
    %v139 = vmul.f32 %v133, 0.01
    %v140 = vsel %vm136, %v128, %v138
    %v141 = vsel %vm137, %v133, %v139
    %v142 = vlaneseq
    %v143 = vand.u32 %v142, 127
    %v144 = vlaneseq
    %v145 = vshrl.u32 %v144, 7
    %v146 = vadd.s32 %v145, 8
    %v147 = vld [vmem:[%s0] sm:$0xff]
    %v148 = vld [vmem:[%s0 + $0x8] sm:$0xff]
    %v149 = vld [vmem:[%s0 + $0x10] sm:$0xff]
    %v150 = vld [vmem:[%s0 + $0x18] sm:$0xff]
    %v151 = vld [vmem:[%s0 + $0x20] sm:$0xff]
    %v152 = vld [vmem:[%s0 + $0x28] sm:$0xff]
    %153 = vset.pattern.permute.xlu0 0
    %154 = vperm.xlu0 %153, %v147
    %v155 = vpop.permute.xlu0 %154
    %156 = vset.pattern.permute.xlu0 0
    %157 = vperm.xlu0 %156, %v148
    %v158 = vpop.permute.xlu0 %157
    %159 = vset.pattern.permute.xlu0 0
    %160 = vperm.xlu0 %159, %v149
    %v161 = vpop.permute.xlu0 %160
    %162 = vset.pattern.permute.xlu0 0
    %163 = vperm.xlu0 %162, %v150
    %v164 = vpop.permute.xlu0 %163
    %165 = vset.pattern.permute.xlu0 0
    %166 = vperm.xlu0 %165, %v151
    %v167 = vpop.permute.xlu0 %166
    %168 = vset.pattern.permute.xlu0 0
    %169 = vperm.xlu0 %168, %v152
    %v170 = vpop.permute.xlu0 %169
    %vm171 = vcmp.eq.s32.totalorder %v155, %v143
    %vm172 = vcmp.eq.s32.totalorder %v158, %v143
    %vm173 = vcmp.eq.s32.totalorder %v161, %v143
    %vm174 = vcmp.eq.s32.totalorder %v164, %v143
    %vm175 = vcmp.eq.s32.totalorder %v167, %v143
    %vm176 = vcmp.eq.s32.totalorder %v170, %v143
    %v177 = vsel %vm171, 1, 0
    %v178 = vsel %vm172, 1, 0
    %v179 = vsel %vm173, 1, 0
    %v180 = vsel %vm174, 1, 0
    %v181 = vsel %vm175, 1, 0
    %v182 = vsel %vm176, 1, 0
    %v183 = vcvt.s32.f32 %v177
    %v184 = vcvt.s32.f32 %v178
    %v185 = vcvt.s32.f32 %v179
    %v186 = vcvt.s32.f32 %v180
    %v187 = vcvt.s32.f32 %v181
    %v188 = vcvt.s32.f32 %v182
    %v189 = vld [vmem:[%s1] sm:$0xff]
    %v190 = vld [vmem:[%s1 + $0x8] sm:$0xff]
    %v191 = vld [vmem:[%s1 + $0x10] sm:$0xff]
    %v192 = vld [vmem:[%s1 + $0x18] sm:$0xff]
    %v193 = vld [vmem:[%s1 + $0x20] sm:$0xff]
    %v194 = vld [vmem:[%s1 + $0x28] sm:$0xff]
    %195 = vset.pattern.permute.xlu0 0
    %196 = vperm.xlu0 %195, %v189
    %v197 = vpop.permute.xlu0 %196
    %198 = vset.pattern.permute.xlu0 0
    %199 = vperm.xlu0 %198, %v190
    %v200 = vpop.permute.xlu0 %199
    %201 = vset.pattern.permute.xlu0 0
    %202 = vperm.xlu0 %201, %v191
    %v203 = vpop.permute.xlu0 %202
    %204 = vset.pattern.permute.xlu0 0
    %205 = vperm.xlu0 %204, %v192
    %v206 = vpop.permute.xlu0 %205
    %207 = vset.pattern.permute.xlu0 0
    %208 = vperm.xlu0 %207, %v193
    %v209 = vpop.permute.xlu0 %208
    %210 = vset.pattern.permute.xlu0 0
    %211 = vperm.xlu0 %210, %v194
    %v212 = vpop.permute.xlu0 %211
    %vm213 = vcmp.eq.s32.totalorder %v197, %v143
    %vm214 = vcmp.eq.s32.totalorder %v200, %v143
    %vm215 = vcmp.eq.s32.totalorder %v203, %v143
    %vm216 = vcmp.eq.s32.totalorder %v206, %v143
    %vm217 = vcmp.eq.s32.totalorder %v209, %v143
    %vm218 = vcmp.eq.s32.totalorder %v212, %v143
    %v219 = vsel %vm213, 1, 0
    %v220 = vsel %vm214, 1, 0
    %v221 = vsel %vm215, 1, 0
    %v222 = vsel %vm216, 1, 0
    %v223 = vsel %vm217, 1, 0
    %v224 = vsel %vm218, 1, 0
    %v225 = vcvt.s32.f32 %v219
    %v226 = vcvt.s32.f32 %v220
    %v227 = vcvt.s32.f32 %v221
    %v228 = vcvt.s32.f32 %v222
    %v229 = vcvt.s32.f32 %v223
    %v230 = vcvt.s32.f32 %v224
    %v231 = vld [vmem:[%s2] sm:$0x1]
    %v232 = vlaneseq
    %v233 = vshrl.u32 %v232, 7
    %v234 = vsub.s32 0, %v233
    %v235 = vrot.slane %v231, %v234
    %vm236 = vcmp.eq.s32.totalorder %v235, %v145
    %vm237 = vcmp.eq.s32.totalorder %v235, %v146
    %v238 = vsel %vm236, 1, 0
    %v239 = vsel %vm237, 1, 0
    %v240 = vcvt.s32.f32 %v238
    %v241 = vcvt.s32.f32 %v239
    %v242 = vld [vmem:[%s9] sm:$0xff]
    %v243 = vld [vmem:[%s9 + $0x8] sm:$0xff]
    %v244 = vld [vmem:[%s9 + $0x10] sm:$0xff]
    %v245 = vld [vmem:[%s9 + $0x18] sm:$0xff]
    %v246 = vld [vmem:[%s9 + $0x20] sm:$0xff]
    %v247 = vld [vmem:[%s9 + $0x28] sm:$0xff]
    %v248 = vld [vmem:[%s8] sm:$0xff]
    %v249 = vld [vmem:[%s8 + $0x8] sm:$0xff]
    %v250 = vld [vmem:[%s8 + $0x10] sm:$0xff]
    %v251 = vld [vmem:[%s8 + $0x18] sm:$0xff]
    %vm252 = vcmask 261120
    %v254 = vsel %vm252, %v140, 0
    %v257 = vsel %vm252, %v141, 0
    %259 = vmatprep.subr.mxu0 0.0
    %260 = vmatpush1.msra.mxu0 %v248
    %261 = vmatprep.subr.mxu0 0.0
    %262 = vmatpush1.msra.mxu0 %v249
    %263 = vmatprep.subr.mxu0 0.0
    %264 = vmatpush1.msra.mxu0 %v250
    %265 = vmatprep.subr.mxu0 0.0
    %266 = vmatpush1.msra.mxu0 %v251
    %267 = vmatprep.subr.mxu0 0.0
    %268 = vmatpush1.msra.mxu0 0.0
    %269 = vmatprep.subr.mxu0 0.0
    %270 = vmatpush1.msra.mxu0 0.0
    %271 = vmatprep.subr.mxu0 0.0
    %272 = vmatpush1.msra.mxu0 0.0
    %273 = vmatprep.subr.mxu0 0.0
    %274 = vmatpush1.msra.mxu0 0.0
    %275 = vmatprep.subr.mxu0 0.0
    %276 = vmatpush1.msra.mxu0 0.0
    %277 = vmatprep.subr.mxu0 0.0
    %278 = vmatpush1.msra.mxu0 0.0
    %279 = vmatprep.subr.mxu0 0.0
    %280 = vmatpush1.msra.mxu0 0.0
    %281 = vmatprep.subr.mxu0 0.0
    %282 = vmatpush1.msra.mxu0 0.0
    %283 = vmatprep.subr.mxu0 0.0
    %284 = vmatpush1.msra.mxu0 0.0
    %285 = vmatprep.subr.mxu0 0.0
    %286 = vmatpush1.msra.mxu0 0.0
    %287 = vmatprep.subr.mxu0 0.0
    %288 = vmatpush1.msra.mxu0 0.0
    %289 = vmatprep.subr.mxu0 0.0
    %290 = vmatpush1.msra.mxu0 0.0
    %291 = vmatprep.subr.mxu0 0.0
    %292 = vmatpush1.msra.mxu0 0.0
    %293 = vmatprep.subr.mxu0 0.0
    %294 = vmatpush1.msra.mxu0 0.0
    %295 = vmatprep.subr.mxu0 0.0
    %296 = vmatpush1.msra.mxu0 0.0
    %297 = vmatprep.subr.mxu0 0.0
    %298 = vmatpush1.msra.mxu0 0.0
    %299 = vmatprep.subr.mxu0 0.0
    %300 = vmatpush1.msra.mxu0 0.0
    %301 = vmatprep.subr.mxu0 0.0
    %302 = vmatpush1.msra.mxu0 0.0
    %303 = vmatprep.subr.mxu0 0.0
    %304 = vmatpush1.msra.mxu0 0.0
    %305 = vmatprep.subr.mxu0 0.0
    %306 = vmatpush1.msra.mxu0 0.0
    %307 = vmatprep.subr.mxu0 0.0
    %308 = vmatpush1.msra.mxu0 0.0
    %309 = vmatprep.subr.mxu0 0.0
    %310 = vmatpush1.msra.mxu0 0.0
    %311 = vmatprep.subr.mxu0 0.0
    %312 = vmatpush1.msra.mxu0 0.0
    %313 = vmatprep.subr.mxu0 0.0
    %314 = vmatpush1.msra.mxu0 0.0
    %315 = vmatprep.subr.mxu0 0.0
    %316 = vmatpush1.msra.mxu0 0.0
    %317 = vmatprep.subr.mxu0 0.0
    %318 = vmatpush1.msra.mxu0 0.0
    %319 = vmatprep.subr.mxu0 0.0
    %320 = vmatpush1.msra.mxu0 0.0
    %321 = vmatprep.subr.mxu0 0.0
    %322 = vmatpush1.msra.mxu0 0.0
    %323 = vmatprep.mubr.f32.mxu0 0.0
    %324 = vmatmul.mubr.f32.gmra.mrb[0].mxu0 %v254
    %v325 = vpop.f32.mrb[0].mxu0
    %v326 = vadd.f32 0.0, %v325
    %v327 = vpop.f32.mrb[0].mxu0
    %328 = vmatprep.mubr.f32.mxu0 0.0
    %329 = vmatmul.mubr.f32.gmra.mrb[0].mxu0 %v257
    %v330 = vpop.f32.mrb[0].mxu0
    %v331 = vadd.f32 0.0, %v330
    %v332 = vpop.f32.mrb[0].mxu0
    %333 = vdwg.mxu0
    %336 = vrot.lane.b32.xlu0 %v326, 95
    %v337 = vpop.permute.xlu0 %336
    %338 = vrot.lane.b32.xlu0 %v331, 95
    %v339 = vpop.permute.xlu0 %338
    %v342 = vsel %vm252, %v326, %v337
    %v343 = vsel %vm252, %v331, %v339
    %vm344 = vcmask 130048
    %v346 = vsel %vm344, %v183, 0
    %v349 = vsel %vm344, %v184, 0
    %v352 = vsel %vm344, %v185, 0
    %v355 = vsel %vm344, %v186, 0
    %v358 = vsel %vm344, %v187, 0
    %v361 = vsel %vm344, %v188, 0
    %363 = vmatprep.subr.mxu0 0.0
    %364 = vmatpush1.msra.mxu0 %v342
    %365 = vmatprep.subr.mxu0 0.0
    %366 = vmatpush1.msra.mxu0 %v343
    %367 = vmatprep.subr.mxu0 0.0
    %368 = vmatpush1.msra.mxu0 0.0
    %369 = vmatprep.subr.mxu0 0.0
    %370 = vmatpush1.msra.mxu0 0.0
    %371 = vmatprep.subr.mxu0 0.0
    %372 = vmatpush1.msra.mxu0 0.0
    %373 = vmatprep.subr.mxu0 0.0
    %374 = vmatpush1.msra.mxu0 0.0
    %375 = vmatprep.subr.mxu0 0.0
    %376 = vmatpush1.msra.mxu0 0.0
    %377 = vmatprep.subr.mxu0 0.0
    %378 = vmatpush1.msra.mxu0 0.0
    %379 = vmatprep.subr.mxu0 0.0
    %380 = vmatpush1.msra.mxu0 0.0
    %381 = vmatprep.subr.mxu0 0.0
    %382 = vmatpush1.msra.mxu0 0.0
    %383 = vmatprep.subr.mxu0 0.0
    %384 = vmatpush1.msra.mxu0 0.0
    %385 = vmatprep.subr.mxu0 0.0
    %386 = vmatpush1.msra.mxu0 0.0
    %387 = vmatprep.subr.mxu0 0.0
    %388 = vmatpush1.msra.mxu0 0.0
    %389 = vmatprep.subr.mxu0 0.0
    %390 = vmatpush1.msra.mxu0 0.0
    %391 = vmatprep.subr.mxu0 0.0
    %392 = vmatpush1.msra.mxu0 0.0
    %393 = vmatprep.subr.mxu0 0.0
    %394 = vmatpush1.msra.mxu0 0.0
    %395 = vmatprep.subr.mxu0 0.0
    %396 = vmatpush1.msra.mxu0 0.0
    %397 = vmatprep.subr.mxu0 0.0
    %398 = vmatpush1.msra.mxu0 0.0
    %399 = vmatprep.subr.mxu0 0.0
    %400 = vmatpush1.msra.mxu0 0.0
    %401 = vmatprep.subr.mxu0 0.0
    %402 = vmatpush1.msra.mxu0 0.0
    %403 = vmatprep.subr.mxu0 0.0
    %404 = vmatpush1.msra.mxu0 0.0
    %405 = vmatprep.subr.mxu0 0.0
    %406 = vmatpush1.msra.mxu0 0.0
    %407 = vmatprep.subr.mxu0 0.0
    %408 = vmatpush1.msra.mxu0 0.0
    %409 = vmatprep.subr.mxu0 0.0
    %410 = vmatpush1.msra.mxu0 0.0
    %411 = vmatprep.subr.mxu0 0.0
    %412 = vmatpush1.msra.mxu0 0.0
    %413 = vmatprep.subr.mxu0 0.0
    %414 = vmatpush1.msra.mxu0 0.0
    %415 = vmatprep.subr.mxu0 0.0
    %416 = vmatpush1.msra.mxu0 0.0
    %417 = vmatprep.subr.mxu0 0.0
    %418 = vmatpush1.msra.mxu0 0.0
    %419 = vmatprep.subr.mxu0 0.0
    %420 = vmatpush1.msra.mxu0 0.0
    %421 = vmatprep.subr.mxu0 0.0
    %422 = vmatpush1.msra.mxu0 0.0
    %423 = vmatprep.subr.mxu0 0.0
    %424 = vmatpush1.msra.mxu0 0.0
    %425 = vmatprep.subr.mxu0 0.0
    %426 = vmatpush1.msra.mxu0 0.0
    %427 = vmatprep.mubr.f32.mxu0 0.0
    %428 = vmatmul.mubr.f32.gmra.mrb[0].mxu0 %v346
    %v429 = vpop.f32.mrb[0].mxu0
    %v430 = vadd.f32 0.0, %v429
    %v431 = vpop.f32.mrb[0].mxu0
    %432 = vmatprep.mubr.f32.mxu0 0.0
    %433 = vmatmul.mubr.f32.gmra.mrb[0].mxu0 %v349
    %v434 = vpop.f32.mrb[0].mxu0
    %v435 = vadd.f32 0.0, %v434
    %v436 = vpop.f32.mrb[0].mxu0
    %437 = vmatprep.mubr.f32.mxu0 0.0
    %438 = vmatmul.mubr.f32.gmra.mrb[0].mxu0 %v352
    %v439 = vpop.f32.mrb[0].mxu0
    %v440 = vadd.f32 0.0, %v439
    %v441 = vpop.f32.mrb[0].mxu0
    %442 = vmatprep.mubr.f32.mxu0 0.0
    %443 = vmatmul.mubr.f32.gmra.mrb[0].mxu0 %v355
    %v444 = vpop.f32.mrb[0].mxu0
    %v445 = vadd.f32 0.0, %v444
    %v446 = vpop.f32.mrb[0].mxu0
    %447 = vmatprep.mubr.f32.mxu0 0.0
    %448 = vmatmul.mubr.f32.gmra.mrb[0].mxu0 %v358
    %v449 = vpop.f32.mrb[0].mxu0
    %v450 = vadd.f32 0.0, %v449
    %v451 = vpop.f32.mrb[0].mxu0
    %452 = vmatprep.mubr.f32.mxu0 0.0
    %453 = vmatmul.mubr.f32.gmra.mrb[0].mxu0 %v361
    %v454 = vpop.f32.mrb[0].mxu0
    %v455 = vadd.f32 0.0, %v454
    %v456 = vpop.f32.mrb[0].mxu0
    %457 = vdwg.mxu0
    %458 = vrot.lane.b32.xlu0 %v326, 64
    %v459 = vpop.permute.xlu0 %458
    %460 = vrot.lane.b32.xlu0 %v331, 64
    %v461 = vpop.permute.xlu0 %460
    %470 = vrot.lane.b32.xlu0 %v430, 96
    %v471 = vpop.permute.xlu0 %470
    %472 = vrot.lane.b32.xlu0 %v435, 96
    %v473 = vpop.permute.xlu0 %472
    %474 = vrot.lane.b32.xlu0 %v440, 96
    %v475 = vpop.permute.xlu0 %474
    %476 = vrot.lane.b32.xlu0 %v445, 96
    %v477 = vpop.permute.xlu0 %476
    %478 = vrot.lane.b32.xlu0 %v450, 96
    %v479 = vpop.permute.xlu0 %478
    %480 = vrot.lane.b32.xlu0 %v455, 96
    %v481 = vpop.permute.xlu0 %480
    %v489 = vsel %vm344, %v225, 0
    %v492 = vsel %vm344, %v226, 0
    %v495 = vsel %vm344, %v227, 0
    %v498 = vsel %vm344, %v228, 0
    %v501 = vsel %vm344, %v229, 0
    %v504 = vsel %vm344, %v230, 0
    %506 = vmatprep.subr.mxu0 0.0
    %507 = vmatpush1.msra.mxu0 %v459
    %508 = vmatprep.subr.mxu0 0.0
    %509 = vmatpush1.msra.mxu0 %v461
    %510 = vmatprep.subr.mxu0 0.0
    %511 = vmatpush1.msra.mxu0 0.0
    %512 = vmatprep.subr.mxu0 0.0
    %513 = vmatpush1.msra.mxu0 0.0
    %514 = vmatprep.subr.mxu0 0.0
    %515 = vmatpush1.msra.mxu0 0.0
    %516 = vmatprep.subr.mxu0 0.0
    %517 = vmatpush1.msra.mxu0 0.0
    %518 = vmatprep.subr.mxu0 0.0
    %519 = vmatpush1.msra.mxu0 0.0
    %520 = vmatprep.subr.mxu0 0.0
    %521 = vmatpush1.msra.mxu0 0.0
    %522 = vmatprep.subr.mxu0 0.0
    %523 = vmatpush1.msra.mxu0 0.0
    %524 = vmatprep.subr.mxu0 0.0
    %525 = vmatpush1.msra.mxu0 0.0
    %526 = vmatprep.subr.mxu0 0.0
    %527 = vmatpush1.msra.mxu0 0.0
    %528 = vmatprep.subr.mxu0 0.0
    %529 = vmatpush1.msra.mxu0 0.0
    %530 = vmatprep.subr.mxu0 0.0
    %531 = vmatpush1.msra.mxu0 0.0
    %532 = vmatprep.subr.mxu0 0.0
    %533 = vmatpush1.msra.mxu0 0.0
    %534 = vmatprep.subr.mxu0 0.0
    %535 = vmatpush1.msra.mxu0 0.0
    %536 = vmatprep.subr.mxu0 0.0
    %537 = vmatpush1.msra.mxu0 0.0
    %538 = vmatprep.subr.mxu0 0.0
    %539 = vmatpush1.msra.mxu0 0.0
    %540 = vmatprep.subr.mxu0 0.0
    %541 = vmatpush1.msra.mxu0 0.0
    %542 = vmatprep.subr.mxu0 0.0
    %543 = vmatpush1.msra.mxu0 0.0
    %544 = vmatprep.subr.mxu0 0.0
    %545 = vmatpush1.msra.mxu0 0.0
    %546 = vmatprep.subr.mxu0 0.0
    %547 = vmatpush1.msra.mxu0 0.0
    %548 = vmatprep.subr.mxu0 0.0
    %549 = vmatpush1.msra.mxu0 0.0
    %550 = vmatprep.subr.mxu0 0.0
    %551 = vmatpush1.msra.mxu0 0.0
    %552 = vmatprep.subr.mxu0 0.0
    %553 = vmatpush1.msra.mxu0 0.0
    %554 = vmatprep.subr.mxu0 0.0
    %555 = vmatpush1.msra.mxu0 0.0
    %556 = vmatprep.subr.mxu0 0.0
    %557 = vmatpush1.msra.mxu0 0.0
    %558 = vmatprep.subr.mxu0 0.0
    %559 = vmatpush1.msra.mxu0 0.0
    %560 = vmatprep.subr.mxu0 0.0
    %561 = vmatpush1.msra.mxu0 0.0
    %562 = vmatprep.subr.mxu0 0.0
    %563 = vmatpush1.msra.mxu0 0.0
    %564 = vmatprep.subr.mxu0 0.0
    %565 = vmatpush1.msra.mxu0 0.0
    %566 = vmatprep.subr.mxu0 0.0
    %567 = vmatpush1.msra.mxu0 0.0
    %568 = vmatprep.subr.mxu0 0.0
    %569 = vmatpush1.msra.mxu0 0.0
    %570 = vmatprep.mubr.f32.mxu0 0.0
    %571 = vmatmul.mubr.f32.gmra.mrb[0].mxu0 %v489
    %v572 = vpop.f32.mrb[0].mxu0
    %v573 = vadd.f32 %v471, %v572
    %v574 = vpop.f32.mrb[0].mxu0
    %575 = vmatprep.mubr.f32.mxu0 0.0
    %576 = vmatmul.mubr.f32.gmra.mrb[0].mxu0 %v492
    %v577 = vpop.f32.mrb[0].mxu0
    %v578 = vadd.f32 %v473, %v577
    %v579 = vpop.f32.mrb[0].mxu0
    %580 = vmatprep.mubr.f32.mxu0 0.0
    %581 = vmatmul.mubr.f32.gmra.mrb[0].mxu0 %v495
    %v582 = vpop.f32.mrb[0].mxu0
    %v583 = vadd.f32 %v475, %v582
    %v584 = vpop.f32.mrb[0].mxu0
    %585 = vmatprep.mubr.f32.mxu0 0.0
    %586 = vmatmul.mubr.f32.gmra.mrb[0].mxu0 %v498
    %v587 = vpop.f32.mrb[0].mxu0
    %v588 = vadd.f32 %v477, %v587
    %v589 = vpop.f32.mrb[0].mxu0
    %590 = vmatprep.mubr.f32.mxu0 0.0
    %591 = vmatmul.mubr.f32.gmra.mrb[0].mxu0 %v501
    %v592 = vpop.f32.mrb[0].mxu0
    %v593 = vadd.f32 %v479, %v592
    %v594 = vpop.f32.mrb[0].mxu0
    %595 = vmatprep.mubr.f32.mxu0 0.0
    %596 = vmatmul.mubr.f32.gmra.mrb[0].mxu0 %v504
    %v597 = vpop.f32.mrb[0].mxu0
    %v598 = vadd.f32 %v481, %v597
    %v599 = vpop.f32.mrb[0].mxu0
    %600 = vdwg.mxu0
    %v601 = vadd.f32 %v573, %v242
    %v602 = vadd.f32 %v578, %v243
    %v603 = vadd.f32 %v583, %v244
    %v604 = vadd.f32 %v588, %v245
    %v605 = vadd.f32 %v593, %v246
    %v606 = vadd.f32 %v598, %v247
    %vm607 = vcmp.gt.f32.partialorder %v601, 0.0
    %vm608 = vcmp.gt.f32.partialorder %v602, 0.0
    %vm609 = vcmp.gt.f32.partialorder %v603, 0.0
    %vm610 = vcmp.gt.f32.partialorder %v604, 0.0
    %vm611 = vcmp.gt.f32.partialorder %v605, 0.0
    %vm612 = vcmp.gt.f32.partialorder %v606, 0.0
    %v613 = vmul.f32 %v601, 0.2
    %v614 = vmul.f32 %v602, 0.2
    %v615 = vmul.f32 %v603, 0.2
    %v616 = vmul.f32 %v604, 0.2
    %v617 = vmul.f32 %v605, 0.2
    %v618 = vmul.f32 %v606, 0.2
    %v619 = vsel %vm607, %v601, %v613
    %v620 = vsel %vm608, %v602, %v614
    %v621 = vsel %vm609, %v603, %v615
    %v622 = vsel %vm610, %v604, %v616
    %v623 = vsel %vm611, %v605, %v617
    %v624 = vsel %vm612, %v606, %v618
    %626 = vset.pattern.permute.xlu0 0
    %627 = vperm.xlu0 %626, %v619
    %v628 = vpop.permute.xlu0 %627
    %631 = vset.pattern.permute.xlu0 0
    %632 = vperm.xlu0 %631, %v620
    %v633 = vpop.permute.xlu0 %632
    %636 = vset.pattern.permute.xlu0 0
    %637 = vperm.xlu0 %636, %v621
    %v638 = vpop.permute.xlu0 %637
    %641 = vset.pattern.permute.xlu0 0
    %642 = vperm.xlu0 %641, %v622
    %v643 = vpop.permute.xlu0 %642
    %646 = vset.pattern.permute.xlu0 0
    %647 = vperm.xlu0 %646, %v623
    %v648 = vpop.permute.xlu0 %647
    %651 = vset.pattern.permute.xlu0 0
    %652 = vperm.xlu0 %651, %v624
    %v653 = vpop.permute.xlu0 %652
    %v655 = vsel %vm213, %v628, -1e+30
    %v656 = vsel %vm214, %v633, -1e+30
    %v657 = vsel %vm215, %v638, -1e+30
    %v658 = vsel %vm216, %v643, -1e+30
    %v659 = vsel %vm217, %v648, -1e+30
    %v660 = vsel %vm218, %v653, -1e+30
    %v661 = vsel %vm344, %v655, -inf
    %v662 = vsel %vm344, %v656, -inf
    %v663 = vsel %vm344, %v657, -inf
    %v664 = vsel %vm344, %v658, -inf
    %v665 = vsel %vm344, %v659, -inf
    %v666 = vmax.f32 %v661, %v665
    %v667 = vsel %vm344, %v660, -inf
    %v668 = vmax.f32 %v662, %v667
    %v669 = vmax.f32 %v666, %v668
    %v670 = vmax.f32 %v663, %v664
    %v671 = vmax.f32 %v669, %v670
    %v672 = vrot.slane %v671, 4
    %v673 = vmax.f32 %v671, %v672
    %v674 = vrot.slane %v673, 2
    %v675 = vmax.f32 %v673, %v674
    %v676 = vrot.slane %v675, 1
    %v677 = vmax.f32 %v675, %v676
    %v678 = vmul.f32 %v225, %v677
    %v679 = vmul.f32 %v226, %v677
    %v680 = vmul.f32 %v227, %v677
    %v681 = vmul.f32 %v228, %v677
    %v682 = vmul.f32 %v229, %v677
    %v683 = vmul.f32 %v230, %v677
    %v684 = vsel %vm344, %v678, 0.0
    %685 = vadd.xlane.f32.xlu0 %v684
    %v686 = vpop.xlane.xlu0 %685
    %v687 = vsel %vm344, %v679, 0.0
    %688 = vadd.xlane.f32.xlu0 %v687
    %v689 = vpop.xlane.xlu0 %688
    %v690 = vsel %vm344, %v680, 0.0
    %691 = vadd.xlane.f32.xlu0 %v690
    %v692 = vpop.xlane.xlu0 %691
    %v693 = vsel %vm344, %v681, 0.0
    %694 = vadd.xlane.f32.xlu0 %v693
    %v695 = vpop.xlane.xlu0 %694
    %v696 = vsel %vm344, %v682, 0.0
    %697 = vadd.xlane.f32.xlu0 %v696
    %v698 = vpop.xlane.xlu0 %697
    %v699 = vsel %vm344, %v683, 0.0
    %700 = vadd.xlane.f32.xlu0 %v699
    %v701 = vpop.xlane.xlu0 %700
    %v702 = vsub.f32 %v619, %v686
    %v703 = vsub.f32 %v620, %v689
    %v704 = vsub.f32 %v621, %v692
    %v705 = vsub.f32 %v622, %v695
    %v706 = vsub.f32 %v623, %v698
    %v707 = vsub.f32 %v624, %v701
    %v708 = vmul.f32 %v702, 1.442695
    %v709 = vpow.pop %v708
    %v710 = vmul.f32 %v703, 1.442695
    %v711 = vpow.pop %v710
    %v712 = vmul.f32 %v704, 1.442695
    %v713 = vpow.pop %v712
    %v714 = vmul.f32 %v705, 1.442695
    %v715 = vpow.pop %v714
    %v716 = vmul.f32 %v706, 1.442695
    %v717 = vpow.pop %v716
    %v718 = vmul.f32 %v707, 1.442695
    %v719 = vpow.pop %v718
    %721 = vset.pattern.permute.xlu0 0
    %722 = vperm.xlu0 %721, %v709
    %v723 = vpop.permute.xlu0 %722
    %726 = vset.pattern.permute.xlu0 0
    %727 = vperm.xlu0 %726, %v711
    %v728 = vpop.permute.xlu0 %727
    %731 = vset.pattern.permute.xlu0 0
    %732 = vperm.xlu0 %731, %v713
    %v733 = vpop.permute.xlu0 %732
    %736 = vset.pattern.permute.xlu0 0
    %737 = vperm.xlu0 %736, %v715
    %v738 = vpop.permute.xlu0 %737
    %741 = vset.pattern.permute.xlu0 0
    %742 = vperm.xlu0 %741, %v717
    %v743 = vpop.permute.xlu0 %742
    %746 = vset.pattern.permute.xlu0 0
    %747 = vperm.xlu0 %746, %v719
    %v748 = vpop.permute.xlu0 %747
    %v750 = vmul.f32 %v430, %v723
    %v751 = vmul.f32 %v435, %v728
    %v752 = vmul.f32 %v440, %v733
    %v753 = vmul.f32 %v445, %v738
    %v754 = vmul.f32 %v450, %v743
    %v755 = vmul.f32 %v455, %v748
    %756 = vrot.lane.b32.xlu0 %v709, 32
    %v757 = vpop.permute.xlu0 %756
    %758 = vrot.lane.b32.xlu0 %v711, 32
    %v759 = vpop.permute.xlu0 %758
    %760 = vrot.lane.b32.xlu0 %v713, 32
    %v761 = vpop.permute.xlu0 %760
    %762 = vrot.lane.b32.xlu0 %v715, 32
    %v763 = vpop.permute.xlu0 %762
    %764 = vrot.lane.b32.xlu0 %v717, 32
    %v765 = vpop.permute.xlu0 %764
    %766 = vrot.lane.b32.xlu0 %v719, 32
    %v767 = vpop.permute.xlu0 %766
    %v774 = vsel %vm252, %v750, %v757
    %v775 = vsel %vm252, %v751, %v759
    %v776 = vsel %vm252, %v752, %v761
    %v777 = vsel %vm252, %v753, %v763
    %v778 = vsel %vm252, %v754, %v765
    %v779 = vsel %vm252, %v755, %v767
    %vm780 = vcmask 392192
    %v782 = vsel %vm780, %v240, 0
    %v785 = vsel %vm780, %v241, 0
    %787 = vmatprep.subr.mxu0 0.0
    %788 = vmatpush1.msra.mxu0 %v774
    %789 = vmatprep.subr.mxu0 0.0
    %790 = vmatpush1.msra.mxu0 %v775
    %791 = vmatprep.subr.mxu0 0.0
    %792 = vmatpush1.msra.mxu0 %v776
    %793 = vmatprep.subr.mxu0 0.0
    %794 = vmatpush1.msra.mxu0 %v777
    %795 = vmatprep.subr.mxu0 0.0
    %796 = vmatpush1.msra.mxu0 %v778
    %797 = vmatprep.subr.mxu0 0.0
    %798 = vmatpush1.msra.mxu0 %v779
    %799 = vmatprep.subr.mxu0 0.0
    %800 = vmatpush1.msra.mxu0 0.0
    %801 = vmatprep.subr.mxu0 0.0
    %802 = vmatpush1.msra.mxu0 0.0
    %803 = vmatprep.subr.mxu0 0.0
    %804 = vmatpush1.msra.mxu0 0.0
    %805 = vmatprep.subr.mxu0 0.0
    %806 = vmatpush1.msra.mxu0 0.0
    %807 = vmatprep.subr.mxu0 0.0
    %808 = vmatpush1.msra.mxu0 0.0
    %809 = vmatprep.subr.mxu0 0.0
    %810 = vmatpush1.msra.mxu0 0.0
    %811 = vmatprep.subr.mxu0 0.0
    %812 = vmatpush1.msra.mxu0 0.0
    %813 = vmatprep.subr.mxu0 0.0
    %814 = vmatpush1.msra.mxu0 0.0
    %815 = vmatprep.subr.mxu0 0.0
    %816 = vmatpush1.msra.mxu0 0.0
    %817 = vmatprep.subr.mxu0 0.0
    %818 = vmatpush1.msra.mxu0 0.0
    %819 = vmatprep.subr.mxu0 0.0
    %820 = vmatpush1.msra.mxu0 0.0
    %821 = vmatprep.subr.mxu0 0.0
    %822 = vmatpush1.msra.mxu0 0.0
    %823 = vmatprep.subr.mxu0 0.0
    %824 = vmatpush1.msra.mxu0 0.0
    %825 = vmatprep.subr.mxu0 0.0
    %826 = vmatpush1.msra.mxu0 0.0
    %827 = vmatprep.subr.mxu0 0.0
    %828 = vmatpush1.msra.mxu0 0.0
    %829 = vmatprep.subr.mxu0 0.0
    %830 = vmatpush1.msra.mxu0 0.0
    %831 = vmatprep.subr.mxu0 0.0
    %832 = vmatpush1.msra.mxu0 0.0
    %833 = vmatprep.subr.mxu0 0.0
    %834 = vmatpush1.msra.mxu0 0.0
    %835 = vmatprep.subr.mxu0 0.0
    %836 = vmatpush1.msra.mxu0 0.0
    %837 = vmatprep.subr.mxu0 0.0
    %838 = vmatpush1.msra.mxu0 0.0
    %839 = vmatprep.subr.mxu0 0.0
    %840 = vmatpush1.msra.mxu0 0.0
    %841 = vmatprep.subr.mxu0 0.0
    %842 = vmatpush1.msra.mxu0 0.0
    %843 = vmatprep.subr.mxu0 0.0
    %844 = vmatpush1.msra.mxu0 0.0
    %845 = vmatprep.subr.mxu0 0.0
    %846 = vmatpush1.msra.mxu0 0.0
    %847 = vmatprep.subr.mxu0 0.0
    %848 = vmatpush1.msra.mxu0 0.0
    %849 = vmatprep.subr.mxu0 0.0
    %850 = vmatpush1.msra.mxu0 0.0
    %851 = vmatprep.mubr.f32.mxu0 0.0
    %852 = vmatmul.mubr.f32.gmra.mrb[0].mxu0 %v782
    %v853 = vpop.f32.mrb[0].mxu0
    %v854 = vadd.f32 0.0, %v853
    %v855 = vpop.f32.mrb[0].mxu0
    %856 = vmatprep.mubr.f32.mxu0 0.0
    %857 = vmatmul.mubr.f32.gmra.mrb[0].mxu0 %v785
    %v858 = vpop.f32.mrb[0].mxu0
    %v859 = vadd.f32 0.0, %v858
    %v860 = vpop.f32.mrb[0].mxu0
    %861 = vdwg.mxu0
    %v862 = vmax.f32 %v854, 1e-30
    %v863 = vmax.f32 %v859, 1e-30
    %v864 = vrcp.pop %v862
    %v865 = vrcp.pop %v863
    %v866 = vmul.f32 %v862, %v864
    %v867 = vmul.f32 %v863, %v865
    %v868 = vsub.f32 2.0, %v866
    %v869 = vsub.f32 2.0, %v867
    %v870 = vmul.f32 %v864, %v868
    %v871 = vmul.f32 %v865, %v869
    %v872 = vmul.f32 %v862, %v870
    %v873 = vmul.f32 %v863, %v871
    %v874 = vsub.f32 2.0, %v872
    %v875 = vsub.f32 2.0, %v873
    %v876 = vmul.f32 %v870, %v874
    %v877 = vmul.f32 %v871, %v875
    %879 = vset.pattern.permute.xlu0 32
    %880 = vperm.xlu0 %879, %v876
    %v881 = vpop.permute.xlu0 %880
    %884 = vset.pattern.permute.xlu0 32
    %885 = vperm.xlu0 %884, %v877
    %v886 = vpop.permute.xlu0 %885
    %v888 = vmul.f32 %v854, %v881
    %v889 = vmul.f32 %v859, %v886
    %890 = vrot.lane.b32.xlu0 %v326, 96
    %v891 = vpop.permute.xlu0 %890
    %892 = vrot.lane.b32.xlu0 %v331, 96
    %v893 = vpop.permute.xlu0 %892
    %v896 = vadd.f32 %v888, %v891
    %v897 = vadd.f32 %v889, %v893
    %vm898 = vcmp.gt.f32.partialorder %v896, 0.0
    %vm899 = vcmp.gt.f32.partialorder %v897, 0.0
    %v900 = vmin.f32 %v896, 0.0
    %v901 = vmin.f32 %v897, 0.0
    %v902 = vmul.f32 %v900, 1.442695
    %v903 = vpow.pop %v902
    %v904 = vmul.f32 %v901, 1.442695
    %v905 = vpow.pop %v904
    %v906 = vsub.f32 %v903, 1.0
    %v907 = vsub.f32 %v905, 1.0
    %v908 = vsel %vm898, %v896, %v906
    %v909 = vsel %vm899, %v897, %v907
    %v910 = vld [vmem:[%s11] sm:$0xff]
    %v911 = vld [vmem:[%s11 + $0x8] sm:$0xff]
    %v912 = vld [vmem:[%s11 + $0x10] sm:$0xff]
    %v913 = vld [vmem:[%s11 + $0x18] sm:$0xff]
    %v914 = vld [vmem:[%s11 + $0x20] sm:$0xff]
    %v915 = vld [vmem:[%s11 + $0x28] sm:$0xff]
    %v916 = vld [vmem:[%s10] sm:$0xff]
    %v917 = vld [vmem:[%s10 + $0x8] sm:$0xff]
    %v918 = vld [vmem:[%s10 + $0x10] sm:$0xff]
    %v919 = vld [vmem:[%s10 + $0x18] sm:$0xff]
    %v921 = vsel %vm252, %v908, 0
    %v924 = vsel %vm252, %v909, 0
    %926 = vmatprep.subr.mxu0 0.0
    %927 = vmatpush1.msra.mxu0 %v916
    %928 = vmatprep.subr.mxu0 0.0
    %929 = vmatpush1.msra.mxu0 %v917
    %930 = vmatprep.subr.mxu0 0.0
    %931 = vmatpush1.msra.mxu0 %v918
    %932 = vmatprep.subr.mxu0 0.0
    %933 = vmatpush1.msra.mxu0 %v919
    %934 = vmatprep.subr.mxu0 0.0
    %935 = vmatpush1.msra.mxu0 0.0
    %936 = vmatprep.subr.mxu0 0.0
    %937 = vmatpush1.msra.mxu0 0.0
    %938 = vmatprep.subr.mxu0 0.0
    %939 = vmatpush1.msra.mxu0 0.0
    %940 = vmatprep.subr.mxu0 0.0
    %941 = vmatpush1.msra.mxu0 0.0
    %942 = vmatprep.subr.mxu0 0.0
    %943 = vmatpush1.msra.mxu0 0.0
    %944 = vmatprep.subr.mxu0 0.0
    %945 = vmatpush1.msra.mxu0 0.0
    %946 = vmatprep.subr.mxu0 0.0
    %947 = vmatpush1.msra.mxu0 0.0
    %948 = vmatprep.subr.mxu0 0.0
    %949 = vmatpush1.msra.mxu0 0.0
    %950 = vmatprep.subr.mxu0 0.0
    %951 = vmatpush1.msra.mxu0 0.0
    %952 = vmatprep.subr.mxu0 0.0
    %953 = vmatpush1.msra.mxu0 0.0
    %954 = vmatprep.subr.mxu0 0.0
    %955 = vmatpush1.msra.mxu0 0.0
    %956 = vmatprep.subr.mxu0 0.0
    %957 = vmatpush1.msra.mxu0 0.0
    %958 = vmatprep.subr.mxu0 0.0
    %959 = vmatpush1.msra.mxu0 0.0
    %960 = vmatprep.subr.mxu0 0.0
    %961 = vmatpush1.msra.mxu0 0.0
    %962 = vmatprep.subr.mxu0 0.0
    %963 = vmatpush1.msra.mxu0 0.0
    %964 = vmatprep.subr.mxu0 0.0
    %965 = vmatpush1.msra.mxu0 0.0
    %966 = vmatprep.subr.mxu0 0.0
    %967 = vmatpush1.msra.mxu0 0.0
    %968 = vmatprep.subr.mxu0 0.0
    %969 = vmatpush1.msra.mxu0 0.0
    %970 = vmatprep.subr.mxu0 0.0
    %971 = vmatpush1.msra.mxu0 0.0
    %972 = vmatprep.subr.mxu0 0.0
    %973 = vmatpush1.msra.mxu0 0.0
    %974 = vmatprep.subr.mxu0 0.0
    %975 = vmatpush1.msra.mxu0 0.0
    %976 = vmatprep.subr.mxu0 0.0
    %977 = vmatpush1.msra.mxu0 0.0
    %978 = vmatprep.subr.mxu0 0.0
    %979 = vmatpush1.msra.mxu0 0.0
    %980 = vmatprep.subr.mxu0 0.0
    %981 = vmatpush1.msra.mxu0 0.0
    %982 = vmatprep.subr.mxu0 0.0
    %983 = vmatpush1.msra.mxu0 0.0
    %984 = vmatprep.subr.mxu0 0.0
    %985 = vmatpush1.msra.mxu0 0.0
    %986 = vmatprep.subr.mxu0 0.0
    %987 = vmatpush1.msra.mxu0 0.0
    %988 = vmatprep.subr.mxu0 0.0
    %989 = vmatpush1.msra.mxu0 0.0
    %990 = vmatprep.mubr.f32.mxu0 0.0
    %991 = vmatmul.mubr.f32.gmra.mrb[0].mxu0 %v921
    %v992 = vpop.f32.mrb[0].mxu0
    %v993 = vadd.f32 0.0, %v992
    %v994 = vpop.f32.mrb[0].mxu0
    %995 = vmatprep.mubr.f32.mxu0 0.0
    %996 = vmatmul.mubr.f32.gmra.mrb[0].mxu0 %v924
    %v997 = vpop.f32.mrb[0].mxu0
    %v998 = vadd.f32 0.0, %v997
    %v999 = vpop.f32.mrb[0].mxu0
    %1000 = vdwg.mxu0
    %1003 = vrot.lane.b32.xlu0 %v993, 95
    %v1004 = vpop.permute.xlu0 %1003
    %1005 = vrot.lane.b32.xlu0 %v998, 95
    %v1006 = vpop.permute.xlu0 %1005
    %v1009 = vsel %vm252, %v993, %v1004
    %v1010 = vsel %vm252, %v998, %v1006
    %1011 = vmatprep.subr.mxu0 0.0
    %1012 = vmatpush1.msra.mxu0 %v1009
    %1013 = vmatprep.subr.mxu0 0.0
    %1014 = vmatpush1.msra.mxu0 %v1010
    %1015 = vmatprep.subr.mxu0 0.0
    %1016 = vmatpush1.msra.mxu0 0.0
    %1017 = vmatprep.subr.mxu0 0.0
    %1018 = vmatpush1.msra.mxu0 0.0
    %1019 = vmatprep.subr.mxu0 0.0
    %1020 = vmatpush1.msra.mxu0 0.0
    %1021 = vmatprep.subr.mxu0 0.0
    %1022 = vmatpush1.msra.mxu0 0.0
    %1023 = vmatprep.subr.mxu0 0.0
    %1024 = vmatpush1.msra.mxu0 0.0
    %1025 = vmatprep.subr.mxu0 0.0
    %1026 = vmatpush1.msra.mxu0 0.0
    %1027 = vmatprep.subr.mxu0 0.0
    %1028 = vmatpush1.msra.mxu0 0.0
    %1029 = vmatprep.subr.mxu0 0.0
    %1030 = vmatpush1.msra.mxu0 0.0
    %1031 = vmatprep.subr.mxu0 0.0
    %1032 = vmatpush1.msra.mxu0 0.0
    %1033 = vmatprep.subr.mxu0 0.0
    %1034 = vmatpush1.msra.mxu0 0.0
    %1035 = vmatprep.subr.mxu0 0.0
    %1036 = vmatpush1.msra.mxu0 0.0
    %1037 = vmatprep.subr.mxu0 0.0
    %1038 = vmatpush1.msra.mxu0 0.0
    %1039 = vmatprep.subr.mxu0 0.0
    %1040 = vmatpush1.msra.mxu0 0.0
    %1041 = vmatprep.subr.mxu0 0.0
    %1042 = vmatpush1.msra.mxu0 0.0
    %1043 = vmatprep.subr.mxu0 0.0
    %1044 = vmatpush1.msra.mxu0 0.0
    %1045 = vmatprep.subr.mxu0 0.0
    %1046 = vmatpush1.msra.mxu0 0.0
    %1047 = vmatprep.subr.mxu0 0.0
    %1048 = vmatpush1.msra.mxu0 0.0
    %1049 = vmatprep.subr.mxu0 0.0
    %1050 = vmatpush1.msra.mxu0 0.0
    %1051 = vmatprep.subr.mxu0 0.0
    %1052 = vmatpush1.msra.mxu0 0.0
    %1053 = vmatprep.subr.mxu0 0.0
    %1054 = vmatpush1.msra.mxu0 0.0
    %1055 = vmatprep.subr.mxu0 0.0
    %1056 = vmatpush1.msra.mxu0 0.0
    %1057 = vmatprep.subr.mxu0 0.0
    %1058 = vmatpush1.msra.mxu0 0.0
    %1059 = vmatprep.subr.mxu0 0.0
    %1060 = vmatpush1.msra.mxu0 0.0
    %1061 = vmatprep.subr.mxu0 0.0
    %1062 = vmatpush1.msra.mxu0 0.0
    %1063 = vmatprep.subr.mxu0 0.0
    %1064 = vmatpush1.msra.mxu0 0.0
    %1065 = vmatprep.subr.mxu0 0.0
    %1066 = vmatpush1.msra.mxu0 0.0
    %1067 = vmatprep.subr.mxu0 0.0
    %1068 = vmatpush1.msra.mxu0 0.0
    %1069 = vmatprep.subr.mxu0 0.0
    %1070 = vmatpush1.msra.mxu0 0.0
    %1071 = vmatprep.subr.mxu0 0.0
    %1072 = vmatpush1.msra.mxu0 0.0
    %1073 = vmatprep.subr.mxu0 0.0
    %1074 = vmatpush1.msra.mxu0 0.0
    %1075 = vmatprep.mubr.f32.mxu0 0.0
    %1076 = vmatmul.mubr.f32.gmra.mrb[0].mxu0 %v346
    %v1077 = vpop.f32.mrb[0].mxu0
    %v1078 = vadd.f32 0.0, %v1077
    %v1079 = vpop.f32.mrb[0].mxu0
    %1080 = vmatprep.mubr.f32.mxu0 0.0
    %1081 = vmatmul.mubr.f32.gmra.mrb[0].mxu0 %v349
    %v1082 = vpop.f32.mrb[0].mxu0
    %v1083 = vadd.f32 0.0, %v1082
    %v1084 = vpop.f32.mrb[0].mxu0
    %1085 = vmatprep.mubr.f32.mxu0 0.0
    %1086 = vmatmul.mubr.f32.gmra.mrb[0].mxu0 %v352
    %v1087 = vpop.f32.mrb[0].mxu0
    %v1088 = vadd.f32 0.0, %v1087
    %v1089 = vpop.f32.mrb[0].mxu0
    %1090 = vmatprep.mubr.f32.mxu0 0.0
    %1091 = vmatmul.mubr.f32.gmra.mrb[0].mxu0 %v355
    %v1092 = vpop.f32.mrb[0].mxu0
    %v1093 = vadd.f32 0.0, %v1092
    %v1094 = vpop.f32.mrb[0].mxu0
    %1095 = vmatprep.mubr.f32.mxu0 0.0
    %1096 = vmatmul.mubr.f32.gmra.mrb[0].mxu0 %v358
    %v1097 = vpop.f32.mrb[0].mxu0
    %v1098 = vadd.f32 0.0, %v1097
    %v1099 = vpop.f32.mrb[0].mxu0
    %1100 = vmatprep.mubr.f32.mxu0 0.0
    %1101 = vmatmul.mubr.f32.gmra.mrb[0].mxu0 %v361
    %v1102 = vpop.f32.mrb[0].mxu0
    %v1103 = vadd.f32 0.0, %v1102
    %v1104 = vpop.f32.mrb[0].mxu0
    %1105 = vdwg.mxu0
    %1106 = vrot.lane.b32.xlu0 %v993, 64
    %v1107 = vpop.permute.xlu0 %1106
    %1108 = vrot.lane.b32.xlu0 %v998, 64
    %v1109 = vpop.permute.xlu0 %1108
    %1118 = vrot.lane.b32.xlu0 %v1078, 96
    %v1119 = vpop.permute.xlu0 %1118
    %1120 = vrot.lane.b32.xlu0 %v1083, 96
    %v1121 = vpop.permute.xlu0 %1120
    %1122 = vrot.lane.b32.xlu0 %v1088, 96
    %v1123 = vpop.permute.xlu0 %1122
    %1124 = vrot.lane.b32.xlu0 %v1093, 96
    %v1125 = vpop.permute.xlu0 %1124
    %1126 = vrot.lane.b32.xlu0 %v1098, 96
    %v1127 = vpop.permute.xlu0 %1126
    %1128 = vrot.lane.b32.xlu0 %v1103, 96
    %v1129 = vpop.permute.xlu0 %1128
    %1136 = vmatprep.subr.mxu0 0.0
    %1137 = vmatpush1.msra.mxu0 %v1107
    %1138 = vmatprep.subr.mxu0 0.0
    %1139 = vmatpush1.msra.mxu0 %v1109
    %1140 = vmatprep.subr.mxu0 0.0
    %1141 = vmatpush1.msra.mxu0 0.0
    %1142 = vmatprep.subr.mxu0 0.0
    %1143 = vmatpush1.msra.mxu0 0.0
    %1144 = vmatprep.subr.mxu0 0.0
    %1145 = vmatpush1.msra.mxu0 0.0
    %1146 = vmatprep.subr.mxu0 0.0
    %1147 = vmatpush1.msra.mxu0 0.0
    %1148 = vmatprep.subr.mxu0 0.0
    %1149 = vmatpush1.msra.mxu0 0.0
    %1150 = vmatprep.subr.mxu0 0.0
    %1151 = vmatpush1.msra.mxu0 0.0
    %1152 = vmatprep.subr.mxu0 0.0
    %1153 = vmatpush1.msra.mxu0 0.0
    %1154 = vmatprep.subr.mxu0 0.0
    %1155 = vmatpush1.msra.mxu0 0.0
    %1156 = vmatprep.subr.mxu0 0.0
    %1157 = vmatpush1.msra.mxu0 0.0
    %1158 = vmatprep.subr.mxu0 0.0
    %1159 = vmatpush1.msra.mxu0 0.0
    %1160 = vmatprep.subr.mxu0 0.0
    %1161 = vmatpush1.msra.mxu0 0.0
    %1162 = vmatprep.subr.mxu0 0.0
    %1163 = vmatpush1.msra.mxu0 0.0
    %1164 = vmatprep.subr.mxu0 0.0
    %1165 = vmatpush1.msra.mxu0 0.0
    %1166 = vmatprep.subr.mxu0 0.0
    %1167 = vmatpush1.msra.mxu0 0.0
    %1168 = vmatprep.subr.mxu0 0.0
    %1169 = vmatpush1.msra.mxu0 0.0
    %1170 = vmatprep.subr.mxu0 0.0
    %1171 = vmatpush1.msra.mxu0 0.0
    %1172 = vmatprep.subr.mxu0 0.0
    %1173 = vmatpush1.msra.mxu0 0.0
    %1174 = vmatprep.subr.mxu0 0.0
    %1175 = vmatpush1.msra.mxu0 0.0
    %1176 = vmatprep.subr.mxu0 0.0
    %1177 = vmatpush1.msra.mxu0 0.0
    %1178 = vmatprep.subr.mxu0 0.0
    %1179 = vmatpush1.msra.mxu0 0.0
    %1180 = vmatprep.subr.mxu0 0.0
    %1181 = vmatpush1.msra.mxu0 0.0
    %1182 = vmatprep.subr.mxu0 0.0
    %1183 = vmatpush1.msra.mxu0 0.0
    %1184 = vmatprep.subr.mxu0 0.0
    %1185 = vmatpush1.msra.mxu0 0.0
    %1186 = vmatprep.subr.mxu0 0.0
    %1187 = vmatpush1.msra.mxu0 0.0
    %1188 = vmatprep.subr.mxu0 0.0
    %1189 = vmatpush1.msra.mxu0 0.0
    %1190 = vmatprep.subr.mxu0 0.0
    %1191 = vmatpush1.msra.mxu0 0.0
    %1192 = vmatprep.subr.mxu0 0.0
    %1193 = vmatpush1.msra.mxu0 0.0
    %1194 = vmatprep.subr.mxu0 0.0
    %1195 = vmatpush1.msra.mxu0 0.0
    %1196 = vmatprep.subr.mxu0 0.0
    %1197 = vmatpush1.msra.mxu0 0.0
    %1198 = vmatprep.subr.mxu0 0.0
    %1199 = vmatpush1.msra.mxu0 0.0
    %1200 = vmatprep.mubr.f32.mxu0 0.0
    %1201 = vmatmul.mubr.f32.gmra.mrb[0].mxu0 %v489
    %v1202 = vpop.f32.mrb[0].mxu0
    %v1203 = vadd.f32 %v1119, %v1202
    %v1204 = vpop.f32.mrb[0].mxu0
    %1205 = vmatprep.mubr.f32.mxu0 0.0
    %1206 = vmatmul.mubr.f32.gmra.mrb[0].mxu0 %v492
    %v1207 = vpop.f32.mrb[0].mxu0
    %v1208 = vadd.f32 %v1121, %v1207
    %v1209 = vpop.f32.mrb[0].mxu0
    %1210 = vmatprep.mubr.f32.mxu0 0.0
    %1211 = vmatmul.mubr.f32.gmra.mrb[0].mxu0 %v495
    %v1212 = vpop.f32.mrb[0].mxu0
    %v1213 = vadd.f32 %v1123, %v1212
    %v1214 = vpop.f32.mrb[0].mxu0
    %1215 = vmatprep.mubr.f32.mxu0 0.0
    %1216 = vmatmul.mubr.f32.gmra.mrb[0].mxu0 %v498
    %v1217 = vpop.f32.mrb[0].mxu0
    %v1218 = vadd.f32 %v1125, %v1217
    %v1219 = vpop.f32.mrb[0].mxu0
    %1220 = vmatprep.mubr.f32.mxu0 0.0
    %1221 = vmatmul.mubr.f32.gmra.mrb[0].mxu0 %v501
    %v1222 = vpop.f32.mrb[0].mxu0
    %v1223 = vadd.f32 %v1127, %v1222
    %v1224 = vpop.f32.mrb[0].mxu0
    %1225 = vmatprep.mubr.f32.mxu0 0.0
    %1226 = vmatmul.mubr.f32.gmra.mrb[0].mxu0 %v504
    %v1227 = vpop.f32.mrb[0].mxu0
    %v1228 = vadd.f32 %v1129, %v1227
    %v1229 = vpop.f32.mrb[0].mxu0
    %1230 = vdwg.mxu0
    %v1231 = vadd.f32 %v1203, %v910
    %v1232 = vadd.f32 %v1208, %v911
    %v1233 = vadd.f32 %v1213, %v912
    %v1234 = vadd.f32 %v1218, %v913
    %v1235 = vadd.f32 %v1223, %v914
    %v1236 = vadd.f32 %v1228, %v915
    %vm1237 = vcmp.gt.f32.partialorder %v1231, 0.0
    %vm1238 = vcmp.gt.f32.partialorder %v1232, 0.0
    %vm1239 = vcmp.gt.f32.partialorder %v1233, 0.0
    %vm1240 = vcmp.gt.f32.partialorder %v1234, 0.0
    %vm1241 = vcmp.gt.f32.partialorder %v1235, 0.0
    %vm1242 = vcmp.gt.f32.partialorder %v1236, 0.0
    %v1243 = vmul.f32 %v1231, 0.2
    %v1244 = vmul.f32 %v1232, 0.2
    %v1245 = vmul.f32 %v1233, 0.2
    %v1246 = vmul.f32 %v1234, 0.2
    %v1247 = vmul.f32 %v1235, 0.2
    %v1248 = vmul.f32 %v1236, 0.2
    %v1249 = vsel %vm1237, %v1231, %v1243
    %v1250 = vsel %vm1238, %v1232, %v1244
    %v1251 = vsel %vm1239, %v1233, %v1245
    %v1252 = vsel %vm1240, %v1234, %v1246
    %v1253 = vsel %vm1241, %v1235, %v1247
    %v1254 = vsel %vm1242, %v1236, %v1248
    %1256 = vset.pattern.permute.xlu0 0
    %1257 = vperm.xlu0 %1256, %v1249
    %v1258 = vpop.permute.xlu0 %1257
    %1261 = vset.pattern.permute.xlu0 0
    %1262 = vperm.xlu0 %1261, %v1250
    %v1263 = vpop.permute.xlu0 %1262
    %1266 = vset.pattern.permute.xlu0 0
    %1267 = vperm.xlu0 %1266, %v1251
    %v1268 = vpop.permute.xlu0 %1267
    %1271 = vset.pattern.permute.xlu0 0
    %1272 = vperm.xlu0 %1271, %v1252
    %v1273 = vpop.permute.xlu0 %1272
    %1276 = vset.pattern.permute.xlu0 0
    %1277 = vperm.xlu0 %1276, %v1253
    %v1278 = vpop.permute.xlu0 %1277
    %1281 = vset.pattern.permute.xlu0 0
    %1282 = vperm.xlu0 %1281, %v1254
    %v1283 = vpop.permute.xlu0 %1282
    %v1285 = vsel %vm213, %v1258, -1e+30
    %v1286 = vsel %vm214, %v1263, -1e+30
    %v1287 = vsel %vm215, %v1268, -1e+30
    %v1288 = vsel %vm216, %v1273, -1e+30
    %v1289 = vsel %vm217, %v1278, -1e+30
    %v1290 = vsel %vm218, %v1283, -1e+30
    %v1291 = vsel %vm344, %v1285, -inf
    %v1292 = vsel %vm344, %v1286, -inf
    %v1293 = vsel %vm344, %v1287, -inf
    %v1294 = vsel %vm344, %v1288, -inf
    %v1295 = vsel %vm344, %v1289, -inf
    %v1296 = vmax.f32 %v1291, %v1295
    %v1297 = vsel %vm344, %v1290, -inf
    %v1298 = vmax.f32 %v1292, %v1297
    %v1299 = vmax.f32 %v1296, %v1298
    %v1300 = vmax.f32 %v1293, %v1294
    %v1301 = vmax.f32 %v1299, %v1300
    %v1302 = vrot.slane %v1301, 4
    %v1303 = vmax.f32 %v1301, %v1302
    %v1304 = vrot.slane %v1303, 2
    %v1305 = vmax.f32 %v1303, %v1304
    %v1306 = vrot.slane %v1305, 1
    %v1307 = vmax.f32 %v1305, %v1306
    %v1308 = vmul.f32 %v225, %v1307
    %v1309 = vmul.f32 %v226, %v1307
    %v1310 = vmul.f32 %v227, %v1307
    %v1311 = vmul.f32 %v228, %v1307
    %v1312 = vmul.f32 %v229, %v1307
    %v1313 = vmul.f32 %v230, %v1307
    %v1314 = vsel %vm344, %v1308, 0.0
    %1315 = vadd.xlane.f32.xlu0 %v1314
    %v1316 = vpop.xlane.xlu0 %1315
    %v1317 = vsel %vm344, %v1309, 0.0
    %1318 = vadd.xlane.f32.xlu0 %v1317
    %v1319 = vpop.xlane.xlu0 %1318
    %v1320 = vsel %vm344, %v1310, 0.0
    %1321 = vadd.xlane.f32.xlu0 %v1320
    %v1322 = vpop.xlane.xlu0 %1321
    %v1323 = vsel %vm344, %v1311, 0.0
    %1324 = vadd.xlane.f32.xlu0 %v1323
    %v1325 = vpop.xlane.xlu0 %1324
    %v1326 = vsel %vm344, %v1312, 0.0
    %1327 = vadd.xlane.f32.xlu0 %v1326
    %v1328 = vpop.xlane.xlu0 %1327
    %v1329 = vsel %vm344, %v1313, 0.0
    %1330 = vadd.xlane.f32.xlu0 %v1329
    %v1331 = vpop.xlane.xlu0 %1330
    %v1332 = vsub.f32 %v1249, %v1316
    %v1333 = vsub.f32 %v1250, %v1319
    %v1334 = vsub.f32 %v1251, %v1322
    %v1335 = vsub.f32 %v1252, %v1325
    %v1336 = vsub.f32 %v1253, %v1328
    %v1337 = vsub.f32 %v1254, %v1331
    %v1338 = vmul.f32 %v1332, 1.442695
    %v1339 = vpow.pop %v1338
    %v1340 = vmul.f32 %v1333, 1.442695
    %v1341 = vpow.pop %v1340
    %v1342 = vmul.f32 %v1334, 1.442695
    %v1343 = vpow.pop %v1342
    %v1344 = vmul.f32 %v1335, 1.442695
    %v1345 = vpow.pop %v1344
    %v1346 = vmul.f32 %v1336, 1.442695
    %v1347 = vpow.pop %v1346
    %v1348 = vmul.f32 %v1337, 1.442695
    %v1349 = vpow.pop %v1348
    %1351 = vset.pattern.permute.xlu0 0
    %1352 = vperm.xlu0 %1351, %v1339
    %v1353 = vpop.permute.xlu0 %1352
    %1356 = vset.pattern.permute.xlu0 0
    %1357 = vperm.xlu0 %1356, %v1341
    %v1358 = vpop.permute.xlu0 %1357
    %1361 = vset.pattern.permute.xlu0 0
    %1362 = vperm.xlu0 %1361, %v1343
    %v1363 = vpop.permute.xlu0 %1362
    %1366 = vset.pattern.permute.xlu0 0
    %1367 = vperm.xlu0 %1366, %v1345
    %v1368 = vpop.permute.xlu0 %1367
    %1371 = vset.pattern.permute.xlu0 0
    %1372 = vperm.xlu0 %1371, %v1347
    %v1373 = vpop.permute.xlu0 %1372
    %1376 = vset.pattern.permute.xlu0 0
    %1377 = vperm.xlu0 %1376, %v1349
    %v1378 = vpop.permute.xlu0 %1377
    %v1380 = vmul.f32 %v1078, %v1353
    %v1381 = vmul.f32 %v1083, %v1358
    %v1382 = vmul.f32 %v1088, %v1363
    %v1383 = vmul.f32 %v1093, %v1368
    %v1384 = vmul.f32 %v1098, %v1373
    %v1385 = vmul.f32 %v1103, %v1378
    %1386 = vrot.lane.b32.xlu0 %v1339, 32
    %v1387 = vpop.permute.xlu0 %1386
    %1388 = vrot.lane.b32.xlu0 %v1341, 32
    %v1389 = vpop.permute.xlu0 %1388
    %1390 = vrot.lane.b32.xlu0 %v1343, 32
    %v1391 = vpop.permute.xlu0 %1390
    %1392 = vrot.lane.b32.xlu0 %v1345, 32
    %v1393 = vpop.permute.xlu0 %1392
    %1394 = vrot.lane.b32.xlu0 %v1347, 32
    %v1395 = vpop.permute.xlu0 %1394
    %1396 = vrot.lane.b32.xlu0 %v1349, 32
    %v1397 = vpop.permute.xlu0 %1396
    %v1404 = vsel %vm252, %v1380, %v1387
    %v1405 = vsel %vm252, %v1381, %v1389
    %v1406 = vsel %vm252, %v1382, %v1391
    %v1407 = vsel %vm252, %v1383, %v1393
    %v1408 = vsel %vm252, %v1384, %v1395
    %v1409 = vsel %vm252, %v1385, %v1397
    %1410 = vmatprep.subr.mxu0 0.0
    %1411 = vmatpush1.msra.mxu0 %v1404
    %1412 = vmatprep.subr.mxu0 0.0
    %1413 = vmatpush1.msra.mxu0 %v1405
    %1414 = vmatprep.subr.mxu0 0.0
    %1415 = vmatpush1.msra.mxu0 %v1406
    %1416 = vmatprep.subr.mxu0 0.0
    %1417 = vmatpush1.msra.mxu0 %v1407
    %1418 = vmatprep.subr.mxu0 0.0
    %1419 = vmatpush1.msra.mxu0 %v1408
    %1420 = vmatprep.subr.mxu0 0.0
    %1421 = vmatpush1.msra.mxu0 %v1409
    %1422 = vmatprep.subr.mxu0 0.0
    %1423 = vmatpush1.msra.mxu0 0.0
    %1424 = vmatprep.subr.mxu0 0.0
    %1425 = vmatpush1.msra.mxu0 0.0
    %1426 = vmatprep.subr.mxu0 0.0
    %1427 = vmatpush1.msra.mxu0 0.0
    %1428 = vmatprep.subr.mxu0 0.0
    %1429 = vmatpush1.msra.mxu0 0.0
    %1430 = vmatprep.subr.mxu0 0.0
    %1431 = vmatpush1.msra.mxu0 0.0
    %1432 = vmatprep.subr.mxu0 0.0
    %1433 = vmatpush1.msra.mxu0 0.0
    %1434 = vmatprep.subr.mxu0 0.0
    %1435 = vmatpush1.msra.mxu0 0.0
    %1436 = vmatprep.subr.mxu0 0.0
    %1437 = vmatpush1.msra.mxu0 0.0
    %1438 = vmatprep.subr.mxu0 0.0
    %1439 = vmatpush1.msra.mxu0 0.0
    %1440 = vmatprep.subr.mxu0 0.0
    %1441 = vmatpush1.msra.mxu0 0.0
    %1442 = vmatprep.subr.mxu0 0.0
    %1443 = vmatpush1.msra.mxu0 0.0
    %1444 = vmatprep.subr.mxu0 0.0
    %1445 = vmatpush1.msra.mxu0 0.0
    %1446 = vmatprep.subr.mxu0 0.0
    %1447 = vmatpush1.msra.mxu0 0.0
    %1448 = vmatprep.subr.mxu0 0.0
    %1449 = vmatpush1.msra.mxu0 0.0
    %1450 = vmatprep.subr.mxu0 0.0
    %1451 = vmatpush1.msra.mxu0 0.0
    %1452 = vmatprep.subr.mxu0 0.0
    %1453 = vmatpush1.msra.mxu0 0.0
    %1454 = vmatprep.subr.mxu0 0.0
    %1455 = vmatpush1.msra.mxu0 0.0
    %1456 = vmatprep.subr.mxu0 0.0
    %1457 = vmatpush1.msra.mxu0 0.0
    %1458 = vmatprep.subr.mxu0 0.0
    %1459 = vmatpush1.msra.mxu0 0.0
    %1460 = vmatprep.subr.mxu0 0.0
    %1461 = vmatpush1.msra.mxu0 0.0
    %1462 = vmatprep.subr.mxu0 0.0
    %1463 = vmatpush1.msra.mxu0 0.0
    %1464 = vmatprep.subr.mxu0 0.0
    %1465 = vmatpush1.msra.mxu0 0.0
    %1466 = vmatprep.subr.mxu0 0.0
    %1467 = vmatpush1.msra.mxu0 0.0
    %1468 = vmatprep.subr.mxu0 0.0
    %1469 = vmatpush1.msra.mxu0 0.0
    %1470 = vmatprep.subr.mxu0 0.0
    %1471 = vmatpush1.msra.mxu0 0.0
    %1472 = vmatprep.subr.mxu0 0.0
    %1473 = vmatpush1.msra.mxu0 0.0
    %1474 = vmatprep.mubr.f32.mxu0 0.0
    %1475 = vmatmul.mubr.f32.gmra.mrb[0].mxu0 %v782
    %v1476 = vpop.f32.mrb[0].mxu0
    %v1477 = vadd.f32 0.0, %v1476
    %v1478 = vpop.f32.mrb[0].mxu0
    %1479 = vmatprep.mubr.f32.mxu0 0.0
    %1480 = vmatmul.mubr.f32.gmra.mrb[0].mxu0 %v785
    %v1481 = vpop.f32.mrb[0].mxu0
    %v1482 = vadd.f32 0.0, %v1481
    %v1483 = vpop.f32.mrb[0].mxu0
    %1484 = vdwg.mxu0
    %v1485 = vmax.f32 %v1477, 1e-30
    %v1486 = vmax.f32 %v1482, 1e-30
    %v1487 = vrcp.pop %v1485
    %v1488 = vrcp.pop %v1486
    %v1489 = vmul.f32 %v1485, %v1487
    %v1490 = vmul.f32 %v1486, %v1488
    %v1491 = vsub.f32 2.0, %v1489
    %v1492 = vsub.f32 2.0, %v1490
    %v1493 = vmul.f32 %v1487, %v1491
    %v1494 = vmul.f32 %v1488, %v1492
    %v1495 = vmul.f32 %v1485, %v1493
    %v1496 = vmul.f32 %v1486, %v1494
    %v1497 = vsub.f32 2.0, %v1495
    %v1498 = vsub.f32 2.0, %v1496
    %v1499 = vmul.f32 %v1493, %v1497
    %v1500 = vmul.f32 %v1494, %v1498
    %1502 = vset.pattern.permute.xlu0 32
    %1503 = vperm.xlu0 %1502, %v1499
    %v1504 = vpop.permute.xlu0 %1503
    %1507 = vset.pattern.permute.xlu0 32
    %1508 = vperm.xlu0 %1507, %v1500
    %v1509 = vpop.permute.xlu0 %1508
    %v1511 = vmul.f32 %v1477, %v1504
    %v1512 = vmul.f32 %v1482, %v1509
    %1513 = vrot.lane.b32.xlu0 %v993, 96
    %v1514 = vpop.permute.xlu0 %1513
    %1515 = vrot.lane.b32.xlu0 %v998, 96
    %v1516 = vpop.permute.xlu0 %1515
    %v1519 = vadd.f32 %v1511, %v1514
    %v1520 = vadd.f32 %v1512, %v1516
    %vm1521 = vcmp.gt.f32.partialorder %v1519, 0.0
    %vm1522 = vcmp.gt.f32.partialorder %v1520, 0.0
    %v1523 = vmin.f32 %v1519, 0.0
    %v1524 = vmin.f32 %v1520, 0.0
    %v1525 = vmul.f32 %v1523, 1.442695
    %v1526 = vpow.pop %v1525
    %v1527 = vmul.f32 %v1524, 1.442695
    %v1528 = vpow.pop %v1527
    %v1529 = vsub.f32 %v1526, 1.0
    %v1530 = vsub.f32 %v1528, 1.0
    %v1531 = vsel %vm1521, %v1519, %v1529
    %v1532 = vsel %vm1522, %v1520, %v1530
    %v1533 = vmul.f32 %v1531, %v1531
    %v1534 = vmul.f32 %v1532, %v1532
    %v1535 = vsel %vm252, %v1533, 0.0
    %1536 = vadd.xlane.f32.xlu0 %v1535
    %v1537 = vpop.xlane.xlu0 %1536
    %v1538 = vsel %vm252, %v1534, 0.0
    %1539 = vadd.xlane.f32.xlu0 %v1538
    %v1540 = vpop.xlane.xlu0 %1539
    %v1541 = vmax.f32 %v1537, 1e-24
    %v1542 = vmax.f32 %v1540, 1e-24
    %v1543 = vrsqrt.pop %v1541
    %v1544 = vrsqrt.pop %v1542
    %v1545 = vmul.f32 %v1531, %v1543
    %v1546 = vmul.f32 %v1532, %v1544
    %v1547 = vld [vmem:[%s6] sm:$0xff]
    %v1548 = vld [vmem:[%s6 + $0x8] sm:$0xff]
    %v1549 = vld [vmem:[%s6 + $0x10] sm:$0xff]
    %v1550 = vld [vmem:[%s6 + $0x18] sm:$0xff]
    %v1551 = vld [vmem:[%s7] sm:$0x1]
    %v1553 = vlaneseq
    %v1554 = vshrl.u32 %v1553, 7
    %v1555 = vsub.s32 0, %v1554
    %v1556 = vrot.slane %v1551, %v1555
    %v1559 = vsel %vm252, %v1545, 0
    %v1562 = vsel %vm252, %v1546, 0
    %1564 = vmatprep.subr.mxu0 0.0
    %1565 = vmatpush1.msra.mxu0 %v1547
    %1566 = vmatprep.subr.mxu0 0.0
    %1567 = vmatpush1.msra.mxu0 %v1548
    %1568 = vmatprep.subr.mxu0 0.0
    %1569 = vmatpush1.msra.mxu0 %v1549
    %1570 = vmatprep.subr.mxu0 0.0
    %1571 = vmatpush1.msra.mxu0 %v1550
    %1572 = vmatprep.subr.mxu0 0.0
    %1573 = vmatpush1.msra.mxu0 0.0
    %1574 = vmatprep.subr.mxu0 0.0
    %1575 = vmatpush1.msra.mxu0 0.0
    %1576 = vmatprep.subr.mxu0 0.0
    %1577 = vmatpush1.msra.mxu0 0.0
    %1578 = vmatprep.subr.mxu0 0.0
    %1579 = vmatpush1.msra.mxu0 0.0
    %1580 = vmatprep.subr.mxu0 0.0
    %1581 = vmatpush1.msra.mxu0 0.0
    %1582 = vmatprep.subr.mxu0 0.0
    %1583 = vmatpush1.msra.mxu0 0.0
    %1584 = vmatprep.subr.mxu0 0.0
    %1585 = vmatpush1.msra.mxu0 0.0
    %1586 = vmatprep.subr.mxu0 0.0
    %1587 = vmatpush1.msra.mxu0 0.0
    %1588 = vmatprep.subr.mxu0 0.0
    %1589 = vmatpush1.msra.mxu0 0.0
    %1590 = vmatprep.subr.mxu0 0.0
    %1591 = vmatpush1.msra.mxu0 0.0
    %1592 = vmatprep.subr.mxu0 0.0
    %1593 = vmatpush1.msra.mxu0 0.0
    %1594 = vmatprep.subr.mxu0 0.0
    %1595 = vmatpush1.msra.mxu0 0.0
    %1596 = vmatprep.subr.mxu0 0.0
    %1597 = vmatpush1.msra.mxu0 0.0
    %1598 = vmatprep.subr.mxu0 0.0
    %1599 = vmatpush1.msra.mxu0 0.0
    %1600 = vmatprep.subr.mxu0 0.0
    %1601 = vmatpush1.msra.mxu0 0.0
    %1602 = vmatprep.subr.mxu0 0.0
    %1603 = vmatpush1.msra.mxu0 0.0
    %1604 = vmatprep.subr.mxu0 0.0
    %1605 = vmatpush1.msra.mxu0 0.0
    %1606 = vmatprep.subr.mxu0 0.0
    %1607 = vmatpush1.msra.mxu0 0.0
    %1608 = vmatprep.subr.mxu0 0.0
    %1609 = vmatpush1.msra.mxu0 0.0
    %1610 = vmatprep.subr.mxu0 0.0
    %1611 = vmatpush1.msra.mxu0 0.0
    %1612 = vmatprep.subr.mxu0 0.0
    %1613 = vmatpush1.msra.mxu0 0.0
    %1614 = vmatprep.subr.mxu0 0.0
    %1615 = vmatpush1.msra.mxu0 0.0
    %1616 = vmatprep.subr.mxu0 0.0
    %1617 = vmatpush1.msra.mxu0 0.0
    %1618 = vmatprep.subr.mxu0 0.0
    %1619 = vmatpush1.msra.mxu0 0.0
    %1620 = vmatprep.subr.mxu0 0.0
    %1621 = vmatpush1.msra.mxu0 0.0
    %1622 = vmatprep.subr.mxu0 0.0
    %1623 = vmatpush1.msra.mxu0 0.0
    %1624 = vmatprep.subr.mxu0 0.0
    %1625 = vmatpush1.msra.mxu0 0.0
    %1626 = vmatprep.subr.mxu0 0.0
    %1627 = vmatpush1.msra.mxu0 0.0
    %1628 = vmatprep.mubr.f32.mxu0 0.0
    %1629 = vmatmul.mubr.f32.gmra.mrb[0].mxu0 %v1559
    %v1630 = vpop.f32.mrb[0].mxu0
    %v1631 = vadd.f32 %v1556, %v1630
    %v1632 = vpop.f32.mrb[0].mxu0
    %1633 = vmatprep.mubr.f32.mxu0 0.0
    %1634 = vmatmul.mubr.f32.gmra.mrb[0].mxu0 %v1562
    %v1635 = vpop.f32.mrb[0].mxu0
    %v1636 = vadd.f32 %v1556, %v1635
    %v1637 = vpop.f32.mrb[0].mxu0
    %1638 = vdwg.mxu0
    %vm1639 = vcmp.gt.f32.partialorder %v1631, 0.0
    %vm1640 = vcmp.gt.f32.partialorder %v1636, 0.0
    %v1641 = vmul.f32 %v1631, 0.01
    %v1642 = vmul.f32 %v1636, 0.01
    %v1643 = vsel %vm1639, %v1631, %v1641
    %v1644 = vsel %vm1640, %v1636, %v1642
    %1645 = vst.msk [vmem:[#allocation2] sm:$0xff] %vm344, %v1643
    %1646 = vst.msk [vmem:[#allocation2 + $0x8] sm:$0xff] %vm344, %v1644
    // Predicated region
    $region50: #{tpu_custom_call.1} parent=1 // pred_check
      _
    $region51: #{tpu_custom_call.1} parent=1 // pred_check_branch
      %1648 = sbr.rel (0) target = $region53
    $region52: #{tpu_custom_call.1} parent=1 // pred_region
      %s1650 = ssub.s32 256, 256
      %1651 = vsyncadd [#allocation3], %s1650
      %s1652 = sshll.u32 [#allocation2], 4
      %s1653 = int_to_ptr.vmem [resolvable:$true] %s1652
      %1658 = dma.vmem_to_hbm [thread:$0]  %s1653, 256, %s12, [#allocation3], 128, 128, 8
    $region53: #{tpu_custom_call.1} parent=1 // pred_fallthru
      _
    // Predicated region
    $region54: #{tpu_custom_call.1} parent=1 // pred_check
      _
    $region55: #{tpu_custom_call.1} parent=1 // pred_check_branch
      %1660 = sbr.rel (0) target = $region57
    $region56: #{tpu_custom_call.1} parent=1 // pred_region
      %1661 = dma.done [#allocation3], 256
    $region57: #{tpu_custom_call.1} parent=1 // pred_fallthru
      _
    %1662 = vsyncpa [#allocation3], 1

</llo_original>
